<compile_context>
chip_gen: v7x
topology: tpu7x:2x2x1
jax: 0.10.0
libtpu: 0.0.40
codegen_flags: <defaults>
</compile_context>

<pallas_src>
import functools

import jax
import jax.numpy as jnp
from jax.experimental import pallas as pl
from jax.experimental.pallas import tpu as pltpu

HEIGHT = 28
WIDTH = 28
HW = HEIGHT * WIDTH            # 784 (full-dim blocks -> no feature padding)
HIDDEN = 128
LATENT = 32
BATCH = 4


def _round_up(v, m):
    return (v + m - 1) // m * m


def vae_kernel(x_ref, eps_ref,
               w1_ref, b1_ref,            # encoder Linear(784, 128)       (bf16 / f32)
               wmv_ref, bmv_ref,          # fused mean|log_var Linear(128, 2*latent)
               wd1_ref, bd1_ref,          # decoder Linear(latent, 128)
               wd2_ref, bd2_ref,          # decoder Linear(128, 784)
               out_ref, kl_ref,
               *, batch, block_b, latent):
    x = x_ref[...]                                               # (TB, 784) f32

    # ---- encoder ----
    h = jnp.dot(x.astype(jnp.bfloat16), w1_ref[...],
                preferred_element_type=jnp.float32) + b1_ref[...]
    h = jnp.maximum(h, 0.0)                                      # ReLU

    # fused mean / log_var head: one (128, 2*latent) MXU matmul, then lane-split.
    mv = jnp.dot(h.astype(jnp.bfloat16), wmv_ref[...],
                 preferred_element_type=jnp.float32) + bmv_ref[...]
    mean = mv[:, :latent]
    log_var = mv[:, latent:]

    sigma = jnp.exp(log_var)                                     # matches torch source
    z = mean + sigma * eps_ref[...]                              # reparameterization

    # KL divergence partial sum for this batch tile (mask padded rows; padded
    # rows only carry bias-driven values so exp/sigmoid stay bounded).
    rows = pl.program_id(0) * block_b + jax.lax.broadcasted_iota(
        jnp.int32, (block_b, 1), 0)
    valid = (rows < batch).astype(jnp.float32)                   # (TB, 1)
    kl_terms = (1.0 + log_var - mean * mean - sigma) * valid
    kl_part = -0.5 * jnp.sum(kl_terms)
    # Full (8, 128) block: partial in row 0, zeros elsewhere (8x128-aligned store).
    row8 = jax.lax.broadcasted_iota(jnp.int32, (8, 128), 0)
    kl_ref[...] = jnp.where(row8 == 0, kl_part, 0.0)

    # ---- decoder ----
    hd = jnp.dot(z.astype(jnp.bfloat16), wd1_ref[...],
                 preferred_element_type=jnp.float32) + bd1_ref[...]
    hd = jnp.maximum(hd, 0.0)                                    # ReLU
    logits = jnp.dot(hd.astype(jnp.bfloat16), wd2_ref[...],
                     preferred_element_type=jnp.float32) + bd2_ref[...]
    out_ref[...] = jax.nn.sigmoid(logits).astype(out_ref.dtype)  # Sigmoid (EUP path)


def init_params(key):
    """Deterministic init mimicking torch.nn.Linear default (uniform +-1/sqrt(fan_in))."""
    ks = jax.random.split(key, 10)

    def linear(kw, kb, fan_in, fan_out):
        bound = 1.0 / jnp.sqrt(fan_in)
        w = jax.random.uniform(kw, (fan_in, fan_out), jnp.float32, -bound, bound)
        b = jax.random.uniform(kb, (1, fan_out), jnp.float32, -bound, bound)
        return w, b

    w1, b1 = linear(ks[0], ks[1], HW, HIDDEN)
    wm, bm = linear(ks[2], ks[3], HIDDEN, LATENT)
    wv, bv = linear(ks[4], ks[5], HIDDEN, LATENT)
    wd1, bd1 = linear(ks[6], ks[7], LATENT, HIDDEN)
    wd2, bd2 = linear(ks[8], ks[9], HIDDEN, HW)
    return (w1, b1, wm, bm, wv, bv, wd1, bd1, wd2, bd2)


def prepare_params(params):
    """Fuse / downcast raw f32 params into kernel layout (bf16 weights, f32 biases)."""
    w1, b1, wm, bm, wv, bv, wd1, bd1, wd2, bd2 = params
    w1p = w1.astype(jnp.bfloat16)                                 # (784, 128)
    wmv = jnp.concatenate([wm, wv], axis=1).astype(jnp.bfloat16)  # (128, 64)
    bmv = jnp.concatenate([bm, bv], axis=1)                       # (1, 64) f32
    wd1p = wd1.astype(jnp.bfloat16)                               # (32, 128)
    wd2p = wd2.astype(jnp.bfloat16)                               # (128, 784)
    return (w1p, b1, wmv, bmv, wd1p, bd1, wd2p, bd2)


def vae_forward(x_nchw, eps, kparams, out_dtype=jnp.float32):
    """x_nchw: (B, 1, 28, 28) float32, eps: (B, LATENT) float32."""
    b = x_nchw.shape[0]
    x_flat = x_nchw.reshape(b, -1).astype(jnp.float32)            # torch.flatten(x, 1)

    tb = min(512, _round_up(b, 8))                                # VMEM-safe batch tile
    padded_b = _round_up(b, tb)
    num_tiles = padded_b // tb

    if padded_b != b:
        x_flat = jnp.pad(x_flat, ((0, padded_b - b), (0, 0)))
        eps = jnp.pad(eps, ((0, padded_b - b), (0, 0)))

    w1p, b1, wmv, bmv, wd1p, bd1, wd2p, bd2 = kparams

    def const(shape):
        # Weights / biases: constant block index -> DMA'd once, VMEM-resident.
        return pl.BlockSpec(shape, lambda i: (0, 0))

    kernel = functools.partial(vae_kernel, batch=b, block_b=tb, latent=LATENT)

    # Advisory cost hint for XLA scheduling around the custom call.
    mm_terms = HW * HIDDEN + HIDDEN * 2 * LATENT + LATENT * HIDDEN + HIDDEN * HW
    weight_bytes = 2 * mm_terms                                   # bf16 weights
    bias_bytes = 4 * (HIDDEN + 2 * LATENT + HIDDEN + HW)
    act_bytes = (4 * padded_b * (HW + LATENT)                     # x + eps reads (f32)
                 + padded_b * HW * jnp.dtype(out_dtype).itemsize  # recon write
                 + num_tiles * 8 * 128 * 4)                       # KL partials
    cost = pl.CostEstimate(
        flops=2 * padded_b * mm_terms,
        transcendentals=padded_b * (HW + LATENT),                 # sigmoid + exp
        bytes_accessed=weight_bytes + bias_bytes + act_bytes)

    # Megacore sharding of the batch axis only pays off with >= ~4 tiles
    # (otherwise each TensorCore re-DMAs its own copy of the weights).
    semantics = ("parallel",) if num_tiles >= 4 else ("arbitrary",)

    recon_pad, kl_parts = pl.pallas_call(
        kernel,
        out_shape=(
            jax.ShapeDtypeStruct((padded_b, HW), out_dtype),
            jax.ShapeDtypeStruct((num_tiles * 8, 128), jnp.float32),
        ),
        grid_spec=pltpu.PrefetchScalarGridSpec(
            num_scalar_prefetch=0,
            grid=(num_tiles,),
            in_specs=[
                pl.BlockSpec((tb, HW), lambda i: (i, 0)),         # x tile (pipelined)
                pl.BlockSpec((tb, LATENT), lambda i: (i, 0)),     # eps tile (pipelined)
                const((HW, HIDDEN)), const((1, HIDDEN)),
                const((HIDDEN, 2 * LATENT)), const((1, 2 * LATENT)),
                const((LATENT, HIDDEN)), const((1, HIDDEN)),
                const((HIDDEN, HW)), const((1, HW)),
            ],
            out_specs=[
                pl.BlockSpec((tb, HW), lambda i: (i, 0)),         # recon tile
                pl.BlockSpec((8, 128), lambda i: (i, 0)),         # per-tile KL partial
            ],
        ),
        compiler_params=pltpu.CompilerParams(dimension_semantics=semantics),
        cost_estimate=cost,
    )(x_flat, eps, w1p, b1, wmv, bmv, wd1p, bd1, wd2p, bd2)

    recon = recon_pad[:b].reshape(-1, 1, HEIGHT, WIDTH)           # Decoder's reshape
    kl = jnp.sum(kl_parts[:, 0])                                  # sum of per-tile partials
    return recon, kl


def vae_reference(x_nchw, eps, params):
    """Pure-JAX reference using the same bf16 weight / bf16 activation precision as the kernel."""
    w1, b1, wm, bm, wv, bv, wd1, bd1, wd2, bd2 = params

    def bdot(a, w):
        return jnp.dot(a.astype(jnp.bfloat16), w.astype(jnp.bfloat16),
                       preferred_element_type=jnp.float32)

    x = x_nchw.reshape(x_nchw.shape[0], -1)
    h = jnp.maximum(bdot(x, w1) + b1, 0.0)
    mean = bdot(h, wm) + bm
    log_var = bdot(h, wv) + bv
    sigma = jnp.exp(log_var)
    z = mean + sigma * eps
    kl = -0.5 * jnp.sum(1.0 + log_var - mean ** 2 - sigma)
    hd = jnp.maximum(bdot(z, wd1) + bd1, 0.0)
    recon = jax.nn.sigmoid(bdot(hd, wd2) + bd2)
    return recon.reshape(-1, 1, HEIGHT, WIDTH), kl


if __name__ == "__main__":
    key = jax.random.PRNGKey(0)
    k_x, k_eps, k_params = jax.random.split(key, 3)

    x = jax.random.normal(k_x, (BATCH, 1, HEIGHT, WIDTH), jnp.float32)
    # epsilon ~ N(0, 1), passed in explicitly for determinism (torch.randn_like).
    eps = jax.random.normal(k_eps, (BATCH, LATENT), jnp.float32)
    params = init_params(k_params)
    kparams = prepare_params(params)

    recon, kl = vae_forward(x, eps, kparams)
    jax.block_until_ready((recon, kl))

    recon_expected, kl_expected = vae_reference(x, eps, params)
    assert recon.shape == (BATCH, 1, HEIGHT, WIDTH)
    assert jnp.allclose(recon, recon_expected, atol=2e-3, rtol=1e-3)
    assert jnp.allclose(kl, kl_expected, atol=1e-2, rtol=1e-3)

    print("KERNEL_OK")
</pallas_src>

<mosaic_0001>
module attributes {stable_mosaic.version = 11 : i64} {
  func.func @vae_kernel(%arg0: i32, %arg1: memref<8x784xf32, #tpu.memory_space<vmem>>, %arg2: memref<8x32xf32, #tpu.memory_space<vmem>>, %arg3: memref<784x128xbf16, #tpu.memory_space<vmem>>, %arg4: memref<1x128xf32, #tpu.memory_space<vmem>>, %arg5: memref<128x64xbf16, #tpu.memory_space<vmem>>, %arg6: memref<1x64xf32, #tpu.memory_space<vmem>>, %arg7: memref<32x128xbf16, #tpu.memory_space<vmem>>, %arg8: memref<1x128xf32, #tpu.memory_space<vmem>>, %arg9: memref<128x784xbf16, #tpu.memory_space<vmem>>, %arg10: memref<1x784xf32, #tpu.memory_space<vmem>>, %arg11: memref<8x784xf32, #tpu.memory_space<vmem>>, %arg12: memref<8x128xf32, #tpu.memory_space<vmem>>) attributes {dimension_semantics = [#tpu.dimension_semantics<arbitrary>], iteration_bounds = array<i64: 1>, scalar_prefetch = 0 : i64, scratch_operands = 0 : i64, tpu.core_type = #tpu.core_type<tc>, window_params = [{transform_indices = @transform_0, window_bounds = array<i64: 8, 784>}, {transform_indices = @transform_1, window_bounds = array<i64: 8, 32>}, {pipeline_mode = #tpu.pipeline_mode<synchronous>, transform_indices = @transform_2, window_bounds = array<i64: 784, 128>}, {pipeline_mode = #tpu.pipeline_mode<synchronous>, transform_indices = @transform_3, window_bounds = array<i64: 1, 128>}, {pipeline_mode = #tpu.pipeline_mode<synchronous>, transform_indices = @transform_4, window_bounds = array<i64: 128, 64>}, {pipeline_mode = #tpu.pipeline_mode<synchronous>, transform_indices = @transform_5, window_bounds = array<i64: 1, 64>}, {pipeline_mode = #tpu.pipeline_mode<synchronous>, transform_indices = @transform_6, window_bounds = array<i64: 32, 128>}, {pipeline_mode = #tpu.pipeline_mode<synchronous>, transform_indices = @transform_7, window_bounds = array<i64: 1, 128>}, {pipeline_mode = #tpu.pipeline_mode<synchronous>, transform_indices = @transform_8, window_bounds = array<i64: 128, 784>}, {pipeline_mode = #tpu.pipeline_mode<synchronous>, transform_indices = @transform_9, window_bounds = array<i64: 1, 784>}, {transform_indices = @transform_10, window_bounds = array<i64: 8, 784>}, {transform_indices = @transform_11, window_bounds = array<i64: 8, 128>}]} {
    %c0 = arith.constant 0 : index
    %c0_0 = arith.constant 0 : index
    %0 = vector.load %arg1[%c0, %c0_0] : memref<8x784xf32, #tpu.memory_space<vmem>>, vector<8x784xf32>
    %1 = arith.truncf %0 : vector<8x784xf32> to vector<8x784xbf16>
    %c0_1 = arith.constant 0 : index
    %c0_2 = arith.constant 0 : index
    %2 = vector.load %arg3[%c0_1, %c0_2] : memref<784x128xbf16, #tpu.memory_space<vmem>>, vector<784x128xbf16>
    %cst = arith.constant dense<0.000000e+00> : vector<8x128xf32>
    %3 = tpu.matmul %1, %2, %cst {dimension_numbers = #tpu.dot_dimension_numbers<[1], [0], [0], [1], [0, 0, 1, 1], [], []>} : vector<8x784xbf16>, vector<784x128xbf16>, vector<8x128xf32> -> vector<8x128xf32>
    %c0_3 = arith.constant 0 : index
    %c0_4 = arith.constant 0 : index
    %4 = vector.load %arg4[%c0_3, %c0_4] : memref<1x128xf32, #tpu.memory_space<vmem>>, vector<1x128xf32>
    %5 = vector.broadcast %4 : vector<1x128xf32> to vector<8x128xf32>
    %6 = arith.addf %3, %5 : vector<8x128xf32>
    %cst_5 = arith.constant 0.000000e+00 : f32
    %7 = vector.broadcast %cst_5 : f32 to vector<8x128xf32>
    %8 = arith.maximumf %6, %7 : vector<8x128xf32>
    %9 = arith.truncf %8 : vector<8x128xf32> to vector<8x128xbf16>
    %c0_6 = arith.constant 0 : index
    %c0_7 = arith.constant 0 : index
    %10 = vector.load %arg5[%c0_6, %c0_7] : memref<128x64xbf16, #tpu.memory_space<vmem>>, vector<128x64xbf16>
    %cst_8 = arith.constant dense<0.000000e+00> : vector<8x64xf32>
    %11 = tpu.matmul %9, %10, %cst_8 {dimension_numbers = #tpu.dot_dimension_numbers<[1], [0], [0], [1], [0, 0, 1, 1], [], []>} : vector<8x128xbf16>, vector<128x64xbf16>, vector<8x64xf32> -> vector<8x64xf32>
    %c0_9 = arith.constant 0 : index
    %c0_10 = arith.constant 0 : index
    %12 = vector.load %arg6[%c0_9, %c0_10] : memref<1x64xf32, #tpu.memory_space<vmem>>, vector<1x64xf32>
    %13 = vector.broadcast %12 : vector<1x64xf32> to vector<8x64xf32>
    %14 = arith.addf %11, %13 : vector<8x64xf32>
    %15 = vector.extract_strided_slice %14 {offsets = [0, 0], sizes = [8, 32], strides = [1, 1]} : vector<8x64xf32> to vector<8x32xf32>
    %16 = vector.extract_strided_slice %14 {offsets = [0, 32], sizes = [8, 32], strides = [1, 1]} : vector<8x64xf32> to vector<8x32xf32>
    %17 = math.exp %16 : vector<8x32xf32>
    %c0_11 = arith.constant 0 : index
    %c0_12 = arith.constant 0 : index
    %18 = vector.load %arg2[%c0_11, %c0_12] : memref<8x32xf32, #tpu.memory_space<vmem>>, vector<8x32xf32>
    %19 = arith.mulf %17, %18 : vector<8x32xf32>
    %20 = arith.addf %15, %19 : vector<8x32xf32>
    %c8_i32 = arith.constant 8 : i32
    %21 = arith.muli %arg0, %c8_i32 : i32
    %22 = tpu.iota {dimensions = array<i32: 0>} : vector<8x1xi32>
    %23 = vector.broadcast %21 : i32 to vector<8x1xi32>
    %24 = arith.addi %23, %22 : vector<8x1xi32>
    %c4_i32 = arith.constant 4 : i32
    %25 = vector.broadcast %c4_i32 : i32 to vector<8x1xi32>
    %26 = arith.cmpi slt, %24, %25 : vector<8x1xi32>
    %27 = arith.extui %26 : vector<8x1xi1> to vector<8x1xi32>
    %28 = arith.sitofp %27 : vector<8x1xi32> to vector<8x1xf32>
    %cst_13 = arith.constant 1.000000e+00 : f32
    %29 = vector.broadcast %cst_13 : f32 to vector<8x32xf32>
    %30 = arith.addf %29, %16 : vector<8x32xf32>
    %31 = arith.mulf %15, %15 : vector<8x32xf32>
    %32 = arith.subf %30, %31 : vector<8x32xf32>
    %33 = arith.subf %32, %17 : vector<8x32xf32>
    %34 = vector.broadcast %28 : vector<8x1xf32> to vector<8x32xf32>
    %35 = arith.mulf %33, %34 : vector<8x32xf32>
    %36 = vector.shape_cast %35 : vector<8x32xf32> to vector<1x8x32xf32>
    %cst_14 = arith.constant dense<0.000000e+00> : vector<1xf32>
    %37 = vector.multi_reduction <add>, %36, %cst_14 [1, 2] : vector<1x8x32xf32> to vector<1xf32>
    %38 = vector.shape_cast %37 : vector<1xf32> to vector<1x1x1xf32>
    %39 = vector.extract %38[0, 0, 0] : f32 from vector<1x1x1xf32>
    %cst_15 = arith.constant -5.000000e-01 : f32
    %40 = arith.mulf %cst_15, %39 : f32
    %41 = tpu.iota {dimensions = array<i32: 0>} : vector<8x128xi32>
    %c0_i32 = arith.constant 0 : i32
    %42 = vector.broadcast %c0_i32 : i32 to vector<8x128xi32>
    %43 = arith.cmpi eq, %41, %42 : vector<8x128xi32>
    %cst_16 = arith.constant 0.000000e+00 : f32
    %44 = vector.broadcast %40 : f32 to vector<8x128xf32>
    %45 = vector.broadcast %cst_16 : f32 to vector<8x128xf32>
    %46 = arith.select %43, %44, %45 : vector<8x128xi1>, vector<8x128xf32>
    %c0_17 = arith.constant 0 : index
    %c0_18 = arith.constant 0 : index
    %47 = vector.load %arg12[%c0_17, %c0_18] : memref<8x128xf32, #tpu.memory_space<vmem>>, vector<8x128xf32>
    tpu.vector_store %arg12[%c0_17, %c0_18], %46 {strides = array<i32>} : memref<8x128xf32, #tpu.memory_space<vmem>>, vector<8x128xf32>,
    %48 = arith.truncf %20 : vector<8x32xf32> to vector<8x32xbf16>
    %c0_19 = arith.constant 0 : index
    %c0_20 = arith.constant 0 : index
    %49 = vector.load %arg7[%c0_19, %c0_20] : memref<32x128xbf16, #tpu.memory_space<vmem>>, vector<32x128xbf16>
    %cst_21 = arith.constant dense<0.000000e+00> : vector<8x128xf32>
    %50 = tpu.matmul %48, %49, %cst_21 {dimension_numbers = #tpu.dot_dimension_numbers<[1], [0], [0], [1], [0, 0, 1, 1], [], []>} : vector<8x32xbf16>, vector<32x128xbf16>, vector<8x128xf32> -> vector<8x128xf32>
    %c0_22 = arith.constant 0 : index
    %c0_23 = arith.constant 0 : index
    %51 = vector.load %arg8[%c0_22, %c0_23] : memref<1x128xf32, #tpu.memory_space<vmem>>, vector<1x128xf32>
    %52 = vector.broadcast %51 : vector<1x128xf32> to vector<8x128xf32>
    %53 = arith.addf %50, %52 : vector<8x128xf32>
    %cst_24 = arith.constant 0.000000e+00 : f32
    %54 = vector.broadcast %cst_24 : f32 to vector<8x128xf32>
    %55 = arith.maximumf %53, %54 : vector<8x128xf32>
    %56 = arith.truncf %55 : vector<8x128xf32> to vector<8x128xbf16>
    %c0_25 = arith.constant 0 : index
    %c0_26 = arith.constant 0 : index
    %57 = vector.load %arg9[%c0_25, %c0_26] : memref<128x784xbf16, #tpu.memory_space<vmem>>, vector<128x784xbf16>
    %cst_27 = arith.constant dense<0.000000e+00> : vector<8x784xf32>
    %58 = tpu.matmul %56, %57, %cst_27 {dimension_numbers = #tpu.dot_dimension_numbers<[1], [0], [0], [1], [0, 0, 1, 1], [], []>} : vector<8x128xbf16>, vector<128x784xbf16>, vector<8x784xf32> -> vector<8x784xf32>
    %c0_28 = arith.constant 0 : index
    %c0_29 = arith.constant 0 : index
    %59 = vector.load %arg10[%c0_28, %c0_29] : memref<1x784xf32, #tpu.memory_space<vmem>>, vector<1x784xf32>
    %60 = vector.broadcast %59 : vector<1x784xf32> to vector<8x784xf32>
    %61 = arith.addf %58, %60 : vector<8x784xf32>
    %62 = arith.negf %61 : vector<8x784xf32>
    %63 = math.exp %62 : vector<8x784xf32>
    %cst_30 = arith.constant 1.000000e+00 : f32
    %64 = vector.broadcast %cst_30 : f32 to vector<8x784xf32>
    %65 = arith.addf %64, %63 : vector<8x784xf32>
    %66 = arith.divf %64, %65 : vector<8x784xf32>
    %c0_31 = arith.constant 0 : index
    %c0_32 = arith.constant 0 : index
    %67 = vector.load %arg11[%c0_31, %c0_32] : memref<8x784xf32, #tpu.memory_space<vmem>>, vector<8x784xf32>
    tpu.vector_store %arg11[%c0_31, %c0_32], %66 {strides = array<i32>} : memref<8x784xf32, #tpu.memory_space<vmem>>, vector<8x784xf32>,
    return
  }
  func.func @transform_0(%arg0: i32) -> (i32, i32) {
    %c0_i32 = arith.constant 0 : i32
    %c0_i32_0 = arith.constant 0 : i32
    return %arg0, %c0_i32 : i32, i32
  }
  func.func @transform_1(%arg0: i32) -> (i32, i32) {
    %c0_i32 = arith.constant 0 : i32
    %c0_i32_0 = arith.constant 0 : i32
    return %arg0, %c0_i32 : i32, i32
  }
  func.func @transform_2(%arg0: i32) -> (i32, i32) {
    %c0_i32 = arith.constant 0 : i32
    %c0_i32_0 = arith.constant 0 : i32
    %c0_i32_1 = arith.constant 0 : i32
    return %c0_i32, %c0_i32_0 : i32, i32
  }
  func.func @transform_3(%arg0: i32) -> (i32, i32) {
    %c0_i32 = arith.constant 0 : i32
    %c0_i32_0 = arith.constant 0 : i32
    %c0_i32_1 = arith.constant 0 : i32
    return %c0_i32, %c0_i32_0 : i32, i32
  }
  func.func @transform_4(%arg0: i32) -> (i32, i32) {
    %c0_i32 = arith.constant 0 : i32
    %c0_i32_0 = arith.constant 0 : i32
    %c0_i32_1 = arith.constant 0 : i32
    return %c0_i32, %c0_i32_0 : i32, i32
  }
  func.func @transform_5(%arg0: i32) -> (i32, i32) {
    %c0_i32 = arith.constant 0 : i32
    %c0_i32_0 = arith.constant 0 : i32
    %c0_i32_1 = arith.constant 0 : i32
    return %c0_i32, %c0_i32_0 : i32, i32
  }
  func.func @transform_6(%arg0: i32) -> (i32, i32) {
    %c0_i32 = arith.constant 0 : i32
    %c0_i32_0 = arith.constant 0 : i32
    %c0_i32_1 = arith.constant 0 : i32
    return %c0_i32, %c0_i32_0 : i32, i32
  }
  func.func @transform_7(%arg0: i32) -> (i32, i32) {
    %c0_i32 = arith.constant 0 : i32
    %c0_i32_0 = arith.constant 0 : i32
    %c0_i32_1 = arith.constant 0 : i32
    return %c0_i32, %c0_i32_0 : i32, i32
  }
  func.func @transform_8(%arg0: i32) -> (i32, i32) {
    %c0_i32 = arith.constant 0 : i32
    %c0_i32_0 = arith.constant 0 : i32
    %c0_i32_1 = arith.constant 0 : i32
    return %c0_i32, %c0_i32_0 : i32, i32
  }
  func.func @transform_9(%arg0: i32) -> (i32, i32) {
    %c0_i32 = arith.constant 0 : i32
    %c0_i32_0 = arith.constant 0 : i32
    %c0_i32_1 = arith.constant 0 : i32
    return %c0_i32, %c0_i32_0 : i32, i32
  }
  func.func @transform_10(%arg0: i32) -> (i32, i32) {
    %c0_i32 = arith.constant 0 : i32
    %c0_i32_0 = arith.constant 0 : i32
    return %arg0, %c0_i32 : i32, i32
  }
  func.func @transform_11(%arg0: i32) -> (i32, i32) {
    %c0_i32 = arith.constant 0 : i32
    %c0_i32_0 = arith.constant 0 : i32
    return %arg0, %c0_i32 : i32, i32
  }
}

</mosaic_0001>

<llo_original>
// kernel: tpu_custom_call.1
$region0: #{tpu_custom_call.1}
  #allocation0 [shape = 'u32[]', space=smem, size = 0x4, offset = 0x4, fixed_abs, tag = 'smem constant byte address 0x4 - core index']
  #allocation1 [shape = 'u32[144,128]{1,0:T(1,128)}', space=vmem, size = 0x12000, scoped, tag = 'internal scratch']
  %s0 = inlined_call_operand.vmem [shape: f32[8,784], index: 0, kind: input, shape index: {}]
  %s1 = inlined_call_operand.vmem [shape: f32[8,32], index: 1, kind: input, shape index: {}]
  %s2 = inlined_call_operand.vmem [shape: bf16[784,128], index: 2, kind: input, shape index: {}]
  %s3 = inlined_call_operand.vmem [shape: f32[1,128], index: 3, kind: input, shape index: {}]
  %s4 = inlined_call_operand.vmem [shape: bf16[128,64], index: 4, kind: input, shape index: {}]
  %s5 = inlined_call_operand.vmem [shape: f32[1,64], index: 5, kind: input, shape index: {}]
  %s6 = inlined_call_operand.vmem [shape: bf16[32,128], index: 6, kind: input, shape index: {}]
  %s7 = inlined_call_operand.vmem [shape: f32[1,128], index: 7, kind: input, shape index: {}]
  %s8 = inlined_call_operand.vmem [shape: bf16[128,784], index: 8, kind: input, shape index: {}]
  %s9 = inlined_call_operand.vmem [shape: f32[1,784], index: 9, kind: input, shape index: {}]
  %s10 = inlined_call_operand.hbm [shape: f32[8,784], index: 10, kind: output, shape index: {0}]
  %s11 = inlined_call_operand.hbm [shape: f32[8,128], index: 11, kind: output, shape index: {1}]
  %12 = xla_tuple %s10, %s11
  %s13 = sld [smem:[#allocation0]]
  $region58: #{tpu_custom_call.1} parent=0
    _
  %s15 = ssub.s32 1, %s13
  %s16 = scalar_select 0, %s15, %s13
  $region1: #{tpu_custom_call.1} parent=0
    #allocation2 [shape = 'u8[28672]{0}', space=vmem, size = 0x7000, scoped, tag = 'output window, operand 0, single buffered']
    #allocation3 [shape = 's32[1]{0}', space=sflag, size = 0x4, scoped, tag = 'scoped memory for tpu_custom_call.1']
    #allocation4 [shape = 'u8[4096]{0}', space=vmem, size = 0x1000, scoped, tag = 'output window, operand 1, single buffered']
    #allocation5 [shape = 's32[1]{0}', space=sflag, size = 0x4, scoped, tag = 'scoped memory for tpu_custom_call.1']
    %17 = vsyncpa [#allocation3], 0
    %18 = vsyncpa [#allocation5], 0
    // Predicated region
    $region2: #{tpu_custom_call.1} parent=1 // pred_check
      _
    $region3: #{tpu_custom_call.1} parent=1 // pred_check_branch
      %20 = sbr.rel (0) target = $region5
    $region4: #{tpu_custom_call.1} parent=1 // pred_region
      _
    $region5: #{tpu_custom_call.1} parent=1 // pred_fallthru
      _
    // Predicated region
    $region6: #{tpu_custom_call.1} parent=1 // pred_check
      _
    $region7: #{tpu_custom_call.1} parent=1 // pred_check_branch
      %22 = sbr.rel (0) target = $region9
    $region8: #{tpu_custom_call.1} parent=1 // pred_region
      _
    $region9: #{tpu_custom_call.1} parent=1 // pred_fallthru
      _
    // Predicated region
    $region10: #{tpu_custom_call.1} parent=1 // pred_check
      _
    $region11: #{tpu_custom_call.1} parent=1 // pred_check_branch
      %24 = sbr.rel (0) target = $region13
    $region12: #{tpu_custom_call.1} parent=1 // pred_region
      _
    $region13: #{tpu_custom_call.1} parent=1 // pred_fallthru
      _
    // Predicated region
    $region14: #{tpu_custom_call.1} parent=1 // pred_check
      _
    $region15: #{tpu_custom_call.1} parent=1 // pred_check_branch
      %26 = sbr.rel (0) target = $region17
    $region16: #{tpu_custom_call.1} parent=1 // pred_region
      _
    $region17: #{tpu_custom_call.1} parent=1 // pred_fallthru
      _
    // Predicated region
    $region18: #{tpu_custom_call.1} parent=1 // pred_check
      _
    $region19: #{tpu_custom_call.1} parent=1 // pred_check_branch
      %28 = sbr.rel (0) target = $region21
    $region20: #{tpu_custom_call.1} parent=1 // pred_region
      _
    $region21: #{tpu_custom_call.1} parent=1 // pred_fallthru
      _
    // Predicated region
    $region22: #{tpu_custom_call.1} parent=1 // pred_check
      _
    $region23: #{tpu_custom_call.1} parent=1 // pred_check_branch
      %30 = sbr.rel (0) target = $region25
    $region24: #{tpu_custom_call.1} parent=1 // pred_region
      _
    $region25: #{tpu_custom_call.1} parent=1 // pred_fallthru
      _
    // Predicated region
    $region26: #{tpu_custom_call.1} parent=1 // pred_check
      _
    $region27: #{tpu_custom_call.1} parent=1 // pred_check_branch
      %32 = sbr.rel (0) target = $region29
    $region28: #{tpu_custom_call.1} parent=1 // pred_region
      _
    $region29: #{tpu_custom_call.1} parent=1 // pred_fallthru
      _
    // Predicated region
    $region30: #{tpu_custom_call.1} parent=1 // pred_check
      _
    $region31: #{tpu_custom_call.1} parent=1 // pred_check_branch
      %34 = sbr.rel (0) target = $region33
    $region32: #{tpu_custom_call.1} parent=1 // pred_region
      _
    $region33: #{tpu_custom_call.1} parent=1 // pred_fallthru
      _
    // Predicated region
    $region34: #{tpu_custom_call.1} parent=1 // pred_check
      _
    $region35: #{tpu_custom_call.1} parent=1 // pred_check_branch
      %36 = sbr.rel (0) target = $region37
    $region36: #{tpu_custom_call.1} parent=1 // pred_region
      _
    $region37: #{tpu_custom_call.1} parent=1 // pred_fallthru
      _
    // Predicated region
    $region38: #{tpu_custom_call.1} parent=1 // pred_check
      _
    $region39: #{tpu_custom_call.1} parent=1 // pred_check_branch
      %38 = sbr.rel (0) target = $region41
    $region40: #{tpu_custom_call.1} parent=1 // pred_region
      _
    $region41: #{tpu_custom_call.1} parent=1 // pred_fallthru
      _
    %v40 = vld [vmem:[%s0] sm:$0xff]
    %v41 = vld [vmem:[%s0 + $0x8] sm:$0xff]
    %v42 = vld [vmem:[%s0 + $0x10] sm:$0xff]
    %v43 = vld [vmem:[%s0 + $0x18] sm:$0xff]
    %v44 = vld [vmem:[%s0 + $0x20] sm:$0xff]
    %v45 = vld [vmem:[%s0 + $0x28] sm:$0xff]
    %v46 = vld [vmem:[%s0 + $0x30] sm:$0xff]
    %v47 = vpack.c.bf16 %v40, %v40
    %v48 = vpack.c.bf16 %v41, %v41
    %v49 = vpack.c.bf16 %v42, %v42
    %v50 = vpack.c.bf16 %v43, %v43
    %v51 = vpack.c.bf16 %v44, %v44
    %v52 = vpack.c.bf16 %v45, %v45
    %v53 = vpack.c.bf16 %v46, %v46
    %v54 = vld [vmem:[%s2] sm:$0xf]
    %v55 = vld [vmem:[%s2 + $0x4] sm:$0xf]
    %v56 = vld [vmem:[%s2 + $0x8] sm:$0xf]
    %v57 = vld [vmem:[%s2 + $0xc] sm:$0xf]
    %v58 = vld [vmem:[%s2 + $0x10] sm:$0xf]
    %v59 = vld [vmem:[%s2 + $0x14] sm:$0xf]
    %v60 = vld [vmem:[%s2 + $0x18] sm:$0xf]
    %v61 = vld [vmem:[%s2 + $0x1c] sm:$0xf]
    %v62 = vld [vmem:[%s2 + $0x20] sm:$0xf]
    %v63 = vld [vmem:[%s2 + $0x24] sm:$0xf]
    %v64 = vld [vmem:[%s2 + $0x28] sm:$0xf]
    %v65 = vld [vmem:[%s2 + $0x2c] sm:$0xf]
    %v66 = vld [vmem:[%s2 + $0x30] sm:$0xf]
    %v67 = vld [vmem:[%s2 + $0x34] sm:$0xf]
    %v68 = vld [vmem:[%s2 + $0x38] sm:$0xf]
    %v69 = vld [vmem:[%s2 + $0x3c] sm:$0xf]
    %v70 = vld [vmem:[%s2 + $0x40] sm:$0xf]
    %v71 = vld [vmem:[%s2 + $0x44] sm:$0xf]
    %v72 = vld [vmem:[%s2 + $0x48] sm:$0xf]
    %v73 = vld [vmem:[%s2 + $0x4c] sm:$0xf]
    %v74 = vld [vmem:[%s2 + $0x50] sm:$0xf]
    %v75 = vld [vmem:[%s2 + $0x54] sm:$0xf]
    %v76 = vld [vmem:[%s2 + $0x58] sm:$0xf]
    %v77 = vld [vmem:[%s2 + $0x5c] sm:$0xf]
    %v78 = vld [vmem:[%s2 + $0x60] sm:$0xf]
    %v79 = vld [vmem:[%s2 + $0x64] sm:$0xf]
    %v80 = vld [vmem:[%s2 + $0x68] sm:$0xf]
    %v81 = vld [vmem:[%s2 + $0x6c] sm:$0xf]
    %v82 = vld [vmem:[%s2 + $0x70] sm:$0xf]
    %v83 = vld [vmem:[%s2 + $0x74] sm:$0xf]
    %v84 = vld [vmem:[%s2 + $0x78] sm:$0xf]
    %v85 = vld [vmem:[%s2 + $0x7c] sm:$0xf]
    %v86 = vld [vmem:[%s2 + $0x80] sm:$0xf]
    %v87 = vld [vmem:[%s2 + $0x84] sm:$0xf]
    %v88 = vld [vmem:[%s2 + $0x88] sm:$0xf]
    %v89 = vld [vmem:[%s2 + $0x8c] sm:$0xf]
    %v90 = vld [vmem:[%s2 + $0x90] sm:$0xf]
    %v91 = vld [vmem:[%s2 + $0x94] sm:$0xf]
    %v92 = vld [vmem:[%s2 + $0x98] sm:$0xf]
    %v93 = vld [vmem:[%s2 + $0x9c] sm:$0xf]
    %v94 = vld [vmem:[%s2 + $0xa0] sm:$0xf]
    %v95 = vld [vmem:[%s2 + $0xa4] sm:$0xf]
    %v96 = vld [vmem:[%s2 + $0xa8] sm:$0xf]
    %v97 = vld [vmem:[%s2 + $0xac] sm:$0xf]
    %v98 = vld [vmem:[%s2 + $0xb0] sm:$0xf]
    %v99 = vld [vmem:[%s2 + $0xb4] sm:$0xf]
    %v100 = vld [vmem:[%s2 + $0xb8] sm:$0xf]
    %v101 = vld [vmem:[%s2 + $0xbc] sm:$0xf]
    %v102 = vld [vmem:[%s2 + $0xc0] sm:$0xf]
    %v103 = vld [vmem:[%s2 + $0xc4] sm:$0xf]
    %v104 = vld [vmem:[%s2 + $0xc8] sm:$0xf]
    %v105 = vld [vmem:[%s2 + $0xcc] sm:$0xf]
    %v106 = vld [vmem:[%s2 + $0xd0] sm:$0xf]
    %v107 = vld [vmem:[%s2 + $0xd4] sm:$0xf]
    %v108 = vld [vmem:[%s2 + $0xd8] sm:$0xf]
    %v109 = vld [vmem:[%s2 + $0xdc] sm:$0xf]
    %v110 = vld [vmem:[%s2 + $0xe0] sm:$0xf]
    %v111 = vld [vmem:[%s2 + $0xe4] sm:$0xf]
    %v112 = vld [vmem:[%s2 + $0xe8] sm:$0xf]
    %v113 = vld [vmem:[%s2 + $0xec] sm:$0xf]
    %v114 = vld [vmem:[%s2 + $0xf0] sm:$0xf]
    %v115 = vld [vmem:[%s2 + $0xf4] sm:$0xf]
    %v116 = vld [vmem:[%s2 + $0xf8] sm:$0xf]
    %v117 = vld [vmem:[%s2 + $0xfc] sm:$0xf]
    %v118 = vld [vmem:[%s2 + $0x100] sm:$0xf]
    %v119 = vld [vmem:[%s2 + $0x104] sm:$0xf]
    %v120 = vld [vmem:[%s2 + $0x108] sm:$0xf]
    %v121 = vld [vmem:[%s2 + $0x10c] sm:$0xf]
    %v122 = vld [vmem:[%s2 + $0x110] sm:$0xf]
    %v123 = vld [vmem:[%s2 + $0x114] sm:$0xf]
    %v124 = vld [vmem:[%s2 + $0x118] sm:$0xf]
    %v125 = vld [vmem:[%s2 + $0x11c] sm:$0xf]
    %v126 = vld [vmem:[%s2 + $0x120] sm:$0xf]
    %v127 = vld [vmem:[%s2 + $0x124] sm:$0xf]
    %v128 = vld [vmem:[%s2 + $0x128] sm:$0xf]
    %v129 = vld [vmem:[%s2 + $0x12c] sm:$0xf]
    %v130 = vld [vmem:[%s2 + $0x130] sm:$0xf]
    %v131 = vld [vmem:[%s2 + $0x134] sm:$0xf]
    %v132 = vld [vmem:[%s2 + $0x138] sm:$0xf]
    %v133 = vld [vmem:[%s2 + $0x13c] sm:$0xf]
    %v134 = vld [vmem:[%s2 + $0x140] sm:$0xf]
    %v135 = vld [vmem:[%s2 + $0x144] sm:$0xf]
    %v136 = vld [vmem:[%s2 + $0x148] sm:$0xf]
    %v137 = vld [vmem:[%s2 + $0x14c] sm:$0xf]
    %v138 = vld [vmem:[%s2 + $0x150] sm:$0xf]
    %v139 = vld [vmem:[%s2 + $0x154] sm:$0xf]
    %v140 = vld [vmem:[%s2 + $0x158] sm:$0xf]
    %v141 = vld [vmem:[%s2 + $0x15c] sm:$0xf]
    %v142 = vld [vmem:[%s2 + $0x160] sm:$0xf]
    %v143 = vld [vmem:[%s2 + $0x164] sm:$0xf]
    %v144 = vld [vmem:[%s2 + $0x168] sm:$0xf]
    %v145 = vld [vmem:[%s2 + $0x16c] sm:$0xf]
    %v146 = vld [vmem:[%s2 + $0x170] sm:$0xf]
    %v147 = vld [vmem:[%s2 + $0x174] sm:$0xf]
    %v148 = vld [vmem:[%s2 + $0x178] sm:$0xf]
    %v149 = vld [vmem:[%s2 + $0x17c] sm:$0xf]
    %v150 = vld [vmem:[%s2 + $0x180] sm:$0xf]
    %v151 = vld [vmem:[%s2 + $0x184] sm:$0xf]
    %v152 = vld [vmem:[%s3] sm:$0x1]
    %v154 = vlaneseq
    %v155 = vshrl.u32 %v154, 7
    %v156 = vsub.s32 0, %v155
    %v157 = vrot.slane %v152, %v156
    %v257 = vunpack.c.l.b16 %v54
    %v258 = vunpack.c.l.b16 %v55
    %v259 = vunpack.c.l.b16 %v56
    %v260 = vunpack.c.l.b16 %v57
    %v261 = vunpack.c.l.b16 %v58
    %v262 = vunpack.c.l.b16 %v59
    %v263 = vunpack.c.l.b16 %v60
    %v264 = vunpack.c.l.b16 %v61
    %v265 = vunpack.c.l.b16 %v62
    %v266 = vunpack.c.l.b16 %v63
    %v267 = vunpack.c.l.b16 %v64
    %v268 = vunpack.c.l.b16 %v65
    %v269 = vunpack.c.l.b16 %v66
    %v270 = vunpack.c.l.b16 %v67
    %v271 = vunpack.c.l.b16 %v68
    %v272 = vunpack.c.l.b16 %v69
    %v273 = vunpack.c.l.b16 %v70
    %v274 = vunpack.c.l.b16 %v71
    %v275 = vunpack.c.l.b16 %v72
    %v276 = vunpack.c.l.b16 %v73
    %v277 = vunpack.c.l.b16 %v74
    %v278 = vunpack.c.l.b16 %v75
    %v279 = vunpack.c.l.b16 %v76
    %v280 = vunpack.c.l.b16 %v77
    %v281 = vunpack.c.l.b16 %v78
    %v282 = vunpack.c.l.b16 %v79
    %v283 = vunpack.c.l.b16 %v80
    %v284 = vunpack.c.l.b16 %v81
    %v285 = vunpack.c.l.b16 %v82
    %v286 = vunpack.c.l.b16 %v83
    %v287 = vunpack.c.l.b16 %v84
    %v288 = vunpack.c.l.b16 %v85
    %v289 = vunpack.c.l.b16 %v86
    %v290 = vunpack.c.l.b16 %v87
    %v291 = vunpack.c.l.b16 %v88
    %v292 = vunpack.c.l.b16 %v89
    %v293 = vunpack.c.l.b16 %v90
    %v294 = vunpack.c.l.b16 %v91
    %v295 = vunpack.c.l.b16 %v92
    %v296 = vunpack.c.l.b16 %v93
    %v297 = vunpack.c.l.b16 %v94
    %v298 = vunpack.c.l.b16 %v95
    %v299 = vunpack.c.l.b16 %v96
    %v300 = vunpack.c.l.b16 %v97
    %v301 = vunpack.c.l.b16 %v98
    %v302 = vunpack.c.l.b16 %v99
    %v303 = vunpack.c.l.b16 %v100
    %v304 = vunpack.c.l.b16 %v101
    %v305 = vunpack.c.l.b16 %v102
    %v306 = vunpack.c.l.b16 %v103
    %v307 = vunpack.c.l.b16 %v104
    %v308 = vunpack.c.l.b16 %v105
    %v309 = vunpack.c.l.b16 %v106
    %v310 = vunpack.c.l.b16 %v107
    %v311 = vunpack.c.l.b16 %v108
    %v312 = vunpack.c.l.b16 %v109
    %v313 = vunpack.c.l.b16 %v110
    %v314 = vunpack.c.l.b16 %v111
    %v315 = vunpack.c.l.b16 %v112
    %v316 = vunpack.c.l.b16 %v113
    %v317 = vunpack.c.l.b16 %v114
    %v318 = vunpack.c.l.b16 %v115
    %v319 = vunpack.c.l.b16 %v116
    %v320 = vunpack.c.l.b16 %v117
    %v321 = vunpack.c.l.b16 %v118
    %v322 = vunpack.c.l.b16 %v119
    %v323 = vunpack.c.l.b16 %v120
    %v324 = vunpack.c.l.b16 %v121
    %v325 = vunpack.c.l.b16 %v122
    %v326 = vunpack.c.l.b16 %v123
    %v327 = vunpack.c.l.b16 %v124
    %v328 = vunpack.c.l.b16 %v125
    %v329 = vunpack.c.l.b16 %v126
    %v330 = vunpack.c.l.b16 %v127
    %v331 = vunpack.c.l.b16 %v128
    %v332 = vunpack.c.l.b16 %v129
    %v333 = vunpack.c.l.b16 %v130
    %v334 = vunpack.c.l.b16 %v131
    %v335 = vunpack.c.l.b16 %v132
    %v336 = vunpack.c.l.b16 %v133
    %v337 = vunpack.c.l.b16 %v134
    %v338 = vunpack.c.l.b16 %v135
    %v339 = vunpack.c.l.b16 %v136
    %v340 = vunpack.c.l.b16 %v137
    %v341 = vunpack.c.l.b16 %v138
    %v342 = vunpack.c.l.b16 %v139
    %v343 = vunpack.c.l.b16 %v140
    %v344 = vunpack.c.l.b16 %v141
    %v345 = vunpack.c.l.b16 %v142
    %v346 = vunpack.c.l.b16 %v143
    %v347 = vunpack.c.l.b16 %v144
    %v348 = vunpack.c.l.b16 %v145
    %v349 = vunpack.c.l.b16 %v146
    %v350 = vunpack.c.l.b16 %v147
    %v351 = vunpack.c.l.b16 %v148
    %v352 = vunpack.c.l.b16 %v149
    %v353 = vunpack.c.l.b16 %v150
    %v354 = vunpack.c.l.b16 %v151
    %v355 = vpack.c.b16 %v258, %v257
    %v356 = vpack.c.b16 %v260, %v259
    %v357 = vpack.c.b16 %v262, %v261
    %v358 = vpack.c.b16 %v264, %v263
    %v359 = vpack.c.b16 %v266, %v265
    %v360 = vpack.c.b16 %v268, %v267
    %v361 = vpack.c.b16 %v270, %v269
    %v362 = vpack.c.b16 %v272, %v271
    %v363 = vpack.c.b16 %v274, %v273
    %v364 = vpack.c.b16 %v276, %v275
    %v365 = vpack.c.b16 %v278, %v277
    %v366 = vpack.c.b16 %v280, %v279
    %v367 = vpack.c.b16 %v282, %v281
    %v368 = vpack.c.b16 %v284, %v283
    %v369 = vpack.c.b16 %v286, %v285
    %v370 = vpack.c.b16 %v288, %v287
    %v371 = vpack.c.b16 %v290, %v289
    %v372 = vpack.c.b16 %v292, %v291
    %v373 = vpack.c.b16 %v294, %v293
    %v374 = vpack.c.b16 %v296, %v295
    %v375 = vpack.c.b16 %v298, %v297
    %v376 = vpack.c.b16 %v300, %v299
    %v377 = vpack.c.b16 %v302, %v301
    %v378 = vpack.c.b16 %v304, %v303
    %v379 = vpack.c.b16 %v306, %v305
    %v380 = vpack.c.b16 %v308, %v307
    %v381 = vpack.c.b16 %v310, %v309
    %v382 = vpack.c.b16 %v312, %v311
    %v383 = vpack.c.b16 %v314, %v313
    %v384 = vpack.c.b16 %v316, %v315
    %v385 = vpack.c.b16 %v318, %v317
    %v386 = vpack.c.b16 %v320, %v319
    %v387 = vpack.c.b16 %v322, %v321
    %v388 = vpack.c.b16 %v324, %v323
    %v389 = vpack.c.b16 %v326, %v325
    %v390 = vpack.c.b16 %v328, %v327
    %v391 = vpack.c.b16 %v330, %v329
    %v392 = vpack.c.b16 %v332, %v331
    %v393 = vpack.c.b16 %v334, %v333
    %v394 = vpack.c.b16 %v336, %v335
    %v395 = vpack.c.b16 %v338, %v337
    %v396 = vpack.c.b16 %v340, %v339
    %v397 = vpack.c.b16 %v342, %v341
    %v398 = vpack.c.b16 %v344, %v343
    %v399 = vpack.c.b16 %v346, %v345
    %v400 = vpack.c.b16 %v348, %v347
    %v401 = vpack.c.b16 %v350, %v349
    %v402 = vpack.c.b16 %v352, %v351
    %v403 = vpack.c.b16 %v354, %v353
    %vm453 = vcmask 130048
    %v455 = vsel %vm453, %v53, 0
    %457 = vmatprep.subr.bf16.mxu0 0
    %458 = vmatpush1.bf16.msra.mxu0 %v355
    %459 = vmatprep.subr.bf16.mxu0 0
    %460 = vmatpush1.bf16.msra.mxu0 %v356
    %461 = vmatprep.subr.bf16.mxu0 0
    %462 = vmatpush1.bf16.msra.mxu0 %v357
    %463 = vmatprep.subr.bf16.mxu0 0
    %464 = vmatpush1.bf16.msra.mxu0 %v358
    %465 = vmatprep.subr.bf16.mxu0 0
    %466 = vmatpush1.bf16.msra.mxu0 %v359
    %467 = vmatprep.subr.bf16.mxu0 0
    %468 = vmatpush1.bf16.msra.mxu0 %v360
    %469 = vmatprep.subr.bf16.mxu0 0
    %470 = vmatpush1.bf16.msra.mxu0 %v361
    %471 = vmatprep.subr.bf16.mxu0 0
    %472 = vmatpush1.bf16.msra.mxu0 %v362
    %473 = vmatprep.subr.bf16.mxu0 0
    %474 = vmatpush1.bf16.msra.mxu0 %v363
    %475 = vmatprep.subr.bf16.mxu0 0
    %476 = vmatpush1.bf16.msra.mxu0 %v364
    %477 = vmatprep.subr.bf16.mxu0 0
    %478 = vmatpush1.bf16.msra.mxu0 %v365
    %479 = vmatprep.subr.bf16.mxu0 0
    %480 = vmatpush1.bf16.msra.mxu0 %v366
    %481 = vmatprep.subr.bf16.mxu0 0
    %482 = vmatpush1.bf16.msra.mxu0 %v367
    %483 = vmatprep.subr.bf16.mxu0 0
    %484 = vmatpush1.bf16.msra.mxu0 %v368
    %485 = vmatprep.subr.bf16.mxu0 0
    %486 = vmatpush1.bf16.msra.mxu0 %v369
    %487 = vmatprep.subr.bf16.mxu0 0
    %488 = vmatpush1.bf16.msra.mxu0 %v370
    %489 = vmatprep.mubr.bf16.mxu0 %v48
    %490 = vmatmul.mubr.bf16.gmra.mrb[0].mxu0 %v47
    %v491 = vpop.f32.mrb[0].mxu0
    %v492 = vadd.f32 %v157, %v491
    %v493 = vpop.f32.mrb[0].mxu0
    %v494 = vpop.f32.mrb[0].mxu0
    %v495 = vpop.f32.mrb[0].mxu0
    %496 = vdwg.mxu0
    %497 = vmatprep.subr.bf16.mxu0 0
    %498 = vmatpush1.bf16.msra.mxu0 %v371
    %499 = vmatprep.subr.bf16.mxu0 0
    %500 = vmatpush1.bf16.msra.mxu0 %v372
    %501 = vmatprep.subr.bf16.mxu0 0
    %502 = vmatpush1.bf16.msra.mxu0 %v373
    %503 = vmatprep.subr.bf16.mxu0 0
    %504 = vmatpush1.bf16.msra.mxu0 %v374
    %505 = vmatprep.subr.bf16.mxu0 0
    %506 = vmatpush1.bf16.msra.mxu0 %v375
    %507 = vmatprep.subr.bf16.mxu0 0
    %508 = vmatpush1.bf16.msra.mxu0 %v376
    %509 = vmatprep.subr.bf16.mxu0 0
    %510 = vmatpush1.bf16.msra.mxu0 %v377
    %511 = vmatprep.subr.bf16.mxu0 0
    %512 = vmatpush1.bf16.msra.mxu0 %v378
    %513 = vmatprep.subr.bf16.mxu0 0
    %514 = vmatpush1.bf16.msra.mxu0 %v379
    %515 = vmatprep.subr.bf16.mxu0 0
    %516 = vmatpush1.bf16.msra.mxu0 %v380
    %517 = vmatprep.subr.bf16.mxu0 0
    %518 = vmatpush1.bf16.msra.mxu0 %v381
    %519 = vmatprep.subr.bf16.mxu0 0
    %520 = vmatpush1.bf16.msra.mxu0 %v382
    %521 = vmatprep.subr.bf16.mxu0 0
    %522 = vmatpush1.bf16.msra.mxu0 %v383
    %523 = vmatprep.subr.bf16.mxu0 0
    %524 = vmatpush1.bf16.msra.mxu0 %v384
    %525 = vmatprep.subr.bf16.mxu0 0
    %526 = vmatpush1.bf16.msra.mxu0 %v385
    %527 = vmatprep.subr.bf16.mxu0 0
    %528 = vmatpush1.bf16.msra.mxu0 %v386
    %529 = vmatprep.mubr.bf16.mxu0 %v50
    %530 = vmatmul.mubr.bf16.gmra.mrb[0].mxu0 %v49
    %v531 = vpop.f32.mrb[0].mxu0
    %v532 = vadd.f32 %v492, %v531
    %v533 = vpop.f32.mrb[0].mxu0
    %v534 = vpop.f32.mrb[0].mxu0
    %v535 = vpop.f32.mrb[0].mxu0
    %536 = vdwg.mxu0
    %537 = vmatprep.subr.bf16.mxu0 0
    %538 = vmatpush1.bf16.msra.mxu0 %v387
    %539 = vmatprep.subr.bf16.mxu0 0
    %540 = vmatpush1.bf16.msra.mxu0 %v388
    %541 = vmatprep.subr.bf16.mxu0 0
    %542 = vmatpush1.bf16.msra.mxu0 %v389
    %543 = vmatprep.subr.bf16.mxu0 0
    %544 = vmatpush1.bf16.msra.mxu0 %v390
    %545 = vmatprep.subr.bf16.mxu0 0
    %546 = vmatpush1.bf16.msra.mxu0 %v391
    %547 = vmatprep.subr.bf16.mxu0 0
    %548 = vmatpush1.bf16.msra.mxu0 %v392
    %549 = vmatprep.subr.bf16.mxu0 0
    %550 = vmatpush1.bf16.msra.mxu0 %v393
    %551 = vmatprep.subr.bf16.mxu0 0
    %552 = vmatpush1.bf16.msra.mxu0 %v394
    %553 = vmatprep.subr.bf16.mxu0 0
    %554 = vmatpush1.bf16.msra.mxu0 %v395
    %555 = vmatprep.subr.bf16.mxu0 0
    %556 = vmatpush1.bf16.msra.mxu0 %v396
    %557 = vmatprep.subr.bf16.mxu0 0
    %558 = vmatpush1.bf16.msra.mxu0 %v397
    %559 = vmatprep.subr.bf16.mxu0 0
    %560 = vmatpush1.bf16.msra.mxu0 %v398
    %561 = vmatprep.subr.bf16.mxu0 0
    %562 = vmatpush1.bf16.msra.mxu0 %v399
    %563 = vmatprep.subr.bf16.mxu0 0
    %564 = vmatpush1.bf16.msra.mxu0 %v400
    %565 = vmatprep.subr.bf16.mxu0 0
    %566 = vmatpush1.bf16.msra.mxu0 %v401
    %567 = vmatprep.subr.bf16.mxu0 0
    %568 = vmatpush1.bf16.msra.mxu0 %v402
    %569 = vmatprep.mubr.bf16.mxu0 %v52
    %570 = vmatmul.mubr.bf16.gmra.mrb[0].mxu0 %v51
    %v571 = vpop.f32.mrb[0].mxu0
    %v572 = vadd.f32 %v532, %v571
    %v573 = vpop.f32.mrb[0].mxu0
    %v574 = vpop.f32.mrb[0].mxu0
    %v575 = vpop.f32.mrb[0].mxu0
    %576 = vdwg.mxu0
    %577 = vmatprep.subr.bf16.mxu0 0
    %578 = vmatpush1.bf16.msra.mxu0 %v403
    %579 = vmatprep.subr.bf16.mxu0 0
    %580 = vmatpush1.bf16.msra.mxu0 0
    %581 = vmatprep.subr.bf16.mxu0 0
    %582 = vmatpush1.bf16.msra.mxu0 0
    %583 = vmatprep.subr.bf16.mxu0 0
    %584 = vmatpush1.bf16.msra.mxu0 0
    %585 = vmatprep.subr.bf16.mxu0 0
    %586 = vmatpush1.bf16.msra.mxu0 0
    %587 = vmatprep.subr.bf16.mxu0 0
    %588 = vmatpush1.bf16.msra.mxu0 0
    %589 = vmatprep.subr.bf16.mxu0 0
    %590 = vmatpush1.bf16.msra.mxu0 0
    %591 = vmatprep.subr.bf16.mxu0 0
    %592 = vmatpush1.bf16.msra.mxu0 0
    %593 = vmatprep.subr.bf16.mxu0 0
    %594 = vmatpush1.bf16.msra.mxu0 0
    %595 = vmatprep.subr.bf16.mxu0 0
    %596 = vmatpush1.bf16.msra.mxu0 0
    %597 = vmatprep.subr.bf16.mxu0 0
    %598 = vmatpush1.bf16.msra.mxu0 0
    %599 = vmatprep.subr.bf16.mxu0 0
    %600 = vmatpush1.bf16.msra.mxu0 0
    %601 = vmatprep.subr.bf16.mxu0 0
    %602 = vmatpush1.bf16.msra.mxu0 0
    %603 = vmatprep.subr.bf16.mxu0 0
    %604 = vmatpush1.bf16.msra.mxu0 0
    %605 = vmatprep.subr.bf16.mxu0 0
    %606 = vmatpush1.bf16.msra.mxu0 0
    %607 = vmatprep.subr.bf16.mxu0 0
    %608 = vmatpush1.bf16.msra.mxu0 0
    %609 = vmatprep.mubr.bf16.mxu0 0
    %610 = vmatmul.mubr.bf16.gmra.mrb[0].mxu0 %v455
    %v611 = vpop.f32.mrb[0].mxu0
    %v612 = vadd.f32 %v572, %v611
    %v613 = vpop.f32.mrb[0].mxu0
    %v614 = vpop.f32.mrb[0].mxu0
    %v615 = vpop.f32.mrb[0].mxu0
    %616 = vdwg.mxu0
    %v617 = vmax.f32 %v612, 0.0
    %v618 = vpack.c.bf16 %v617, %v617
    %v619 = vld [vmem:[%s4] sm:$0xf]
    %v620 = vld [vmem:[%s4 + $0x4] sm:$0xf]
    %v621 = vld [vmem:[%s4 + $0x8] sm:$0xf]
    %v622 = vld [vmem:[%s4 + $0xc] sm:$0xf]
    %v623 = vld [vmem:[%s4 + $0x10] sm:$0xf]
    %v624 = vld [vmem:[%s4 + $0x14] sm:$0xf]
    %v625 = vld [vmem:[%s4 + $0x18] sm:$0xf]
    %v626 = vld [vmem:[%s4 + $0x1c] sm:$0xf]
    %v627 = vld [vmem:[%s4 + $0x20] sm:$0xf]
    %v628 = vld [vmem:[%s4 + $0x24] sm:$0xf]
    %v629 = vld [vmem:[%s4 + $0x28] sm:$0xf]
    %v630 = vld [vmem:[%s4 + $0x2c] sm:$0xf]
    %v631 = vld [vmem:[%s4 + $0x30] sm:$0xf]
    %v632 = vld [vmem:[%s4 + $0x34] sm:$0xf]
    %v633 = vld [vmem:[%s4 + $0x38] sm:$0xf]
    %v634 = vld [vmem:[%s4 + $0x3c] sm:$0xf]
    %v635 = vld [vmem:[%s5] sm:$0x1]
    %v637 = vlaneseq
    %v638 = vshrl.u32 %v637, 7
    %v639 = vsub.s32 0, %v638
    %v640 = vrot.slane %v635, %v639
    %v658 = vunpack.c.l.b16 %v619
    %v659 = vunpack.c.l.b16 %v620
    %v660 = vunpack.c.l.b16 %v621
    %v661 = vunpack.c.l.b16 %v622
    %v662 = vunpack.c.l.b16 %v623
    %v663 = vunpack.c.l.b16 %v624
    %v664 = vunpack.c.l.b16 %v625
    %v665 = vunpack.c.l.b16 %v626
    %v666 = vunpack.c.l.b16 %v627
    %v667 = vunpack.c.l.b16 %v628
    %v668 = vunpack.c.l.b16 %v629
    %v669 = vunpack.c.l.b16 %v630
    %v670 = vunpack.c.l.b16 %v631
    %v671 = vunpack.c.l.b16 %v632
    %v672 = vunpack.c.l.b16 %v633
    %v673 = vunpack.c.l.b16 %v634
    %v674 = vpack.c.b16 %v659, %v658
    %v675 = vpack.c.b16 %v661, %v660
    %v676 = vpack.c.b16 %v663, %v662
    %v677 = vpack.c.b16 %v665, %v664
    %v678 = vpack.c.b16 %v667, %v666
    %v679 = vpack.c.b16 %v669, %v668
    %v680 = vpack.c.b16 %v671, %v670
    %v681 = vpack.c.b16 %v673, %v672
    %690 = vmatprep.subr.bf16.mxu0 0
    %691 = vmatpush1.bf16.msra.mxu0 %v674
    %692 = vmatprep.subr.bf16.mxu0 0
    %693 = vmatpush1.bf16.msra.mxu0 %v675
    %694 = vmatprep.subr.bf16.mxu0 0
    %695 = vmatpush1.bf16.msra.mxu0 %v676
    %696 = vmatprep.subr.bf16.mxu0 0
    %697 = vmatpush1.bf16.msra.mxu0 %v677
    %698 = vmatprep.subr.bf16.mxu0 0
    %699 = vmatpush1.bf16.msra.mxu0 %v678
    %700 = vmatprep.subr.bf16.mxu0 0
    %701 = vmatpush1.bf16.msra.mxu0 %v679
    %702 = vmatprep.subr.bf16.mxu0 0
    %703 = vmatpush1.bf16.msra.mxu0 %v680
    %704 = vmatprep.subr.bf16.mxu0 0
    %705 = vmatpush1.bf16.msra.mxu0 %v681
    %706 = vmatprep.subr.bf16.mxu0 0
    %707 = vmatpush1.bf16.msra.mxu0 0
    %708 = vmatprep.subr.bf16.mxu0 0
    %709 = vmatpush1.bf16.msra.mxu0 0
    %710 = vmatprep.subr.bf16.mxu0 0
    %711 = vmatpush1.bf16.msra.mxu0 0
    %712 = vmatprep.subr.bf16.mxu0 0
    %713 = vmatpush1.bf16.msra.mxu0 0
    %714 = vmatprep.subr.bf16.mxu0 0
    %715 = vmatpush1.bf16.msra.mxu0 0
    %716 = vmatprep.subr.bf16.mxu0 0
    %717 = vmatpush1.bf16.msra.mxu0 0
    %718 = vmatprep.subr.bf16.mxu0 0
    %719 = vmatpush1.bf16.msra.mxu0 0
    %720 = vmatprep.subr.bf16.mxu0 0
    %721 = vmatpush1.bf16.msra.mxu0 0
    %722 = vmatprep.mubr.bf16.mxu0 0
    %723 = vmatmul.mubr.bf16.gmra.mrb[0].mxu0 %v618
    %v724 = vpop.f32.mrb[0].mxu0
    %v725 = vadd.f32 %v640, %v724
    %v726 = vpop.f32.mrb[0].mxu0
    %v727 = vpop.f32.mrb[0].mxu0
    %v728 = vpop.f32.mrb[0].mxu0
    %729 = vdwg.mxu0
    %v730 = vmul.f32 %v725, 1.442695
    %v731 = vpow.pop %v730
    %v732 = vld [vmem:[%s1] sm:$0xff]
    %734 = vrot.lane.b32.xlu0 %v732, 32
    %v735 = vpop.permute.xlu0 %734
    %v737 = vmul.f32 %v731, %v735
    %739 = vrot.lane.b32.xlu0 %v737, 96
    %v740 = vpop.permute.xlu0 %739
    %v742 = vadd.f32 %v725, %v740
    %s743 = smul.u32 0, 8
    %v744 = vlaneseq
    %v745 = vshrl.u32 %v744, 7
    %v746 = vstv %s743
    %v747 = vadd.s32 %v746, %v745
    %vm748 = vcmp.lt.s32.totalorder %v747, 4
    %v749 = vsel %vm748, 1, 0
    %v750 = vcvt.s32.f32 %v749
    %v751 = vadd.f32 %v725, 1.0
    %v752 = vmul.f32 %v725, %v725
    %754 = vrot.lane.b32.xlu0 %v752, 32
    %v755 = vpop.permute.xlu0 %754
    %v757 = vsub.f32 %v751, %v755
    %v758 = vsub.f32 %v757, %v731
    %v759 = vmul.f32 %v758, %v750
    %761 = vrot.lane.b32.xlu0 %v759, 96
    %v762 = vpop.permute.xlu0 %761
    %vm764 = vcmask 261120
    %v765 = vsel %vm764, %v762, 0.0
    %766 = vadd.xlane.f32.xlu0 %v765
    %v767 = vpop.xlane.xlu0 %766
    %v768 = vrot.slane %v767, 4
    %v769 = vadd.f32 %v767, %v768
    %v770 = vrot.slane %v769, 2
    %v771 = vadd.f32 %v769, %v770
    %v772 = vrot.slane %v771, 1
    %v773 = vadd.f32 %v771, %v772
    %s774 = vtos %v773
    %s775 = smul.f32 %s774, -0.5
    %vm776 = vcmp.eq.s32.totalorder %v745, 0
    %v777 = vstv %s775
    %v778 = vsel %vm776, %v777, 0.0
    %779 = vst [vmem:[#allocation4] sm:$0xff] %v778
    %v780 = vpack.c.bf16 %v742, %v742
    %v781 = vld [vmem:[%s6] sm:$0xf]
    %v782 = vld [vmem:[%s6 + $0x4] sm:$0xf]
    %v783 = vld [vmem:[%s6 + $0x8] sm:$0xf]
    %v784 = vld [vmem:[%s6 + $0xc] sm:$0xf]
    %v785 = vld [vmem:[%s7] sm:$0x1]
    %v787 = vlaneseq
    %v788 = vshrl.u32 %v787, 7
    %v789 = vsub.s32 0, %v788
    %v790 = vrot.slane %v785, %v789
    %v796 = vunpack.c.l.b16 %v781
    %v797 = vunpack.c.l.b16 %v782
    %v798 = vunpack.c.l.b16 %v783
    %v799 = vunpack.c.l.b16 %v784
    %v800 = vpack.c.b16 %v797, %v796
    %v801 = vpack.c.b16 %v799, %v798
    %v805 = vsel %vm764, %v780, 0
    %807 = vmatprep.subr.bf16.mxu0 0
    %808 = vmatpush1.bf16.msra.mxu0 %v800
    %809 = vmatprep.subr.bf16.mxu0 0
    %810 = vmatpush1.bf16.msra.mxu0 %v801
    %811 = vmatprep.subr.bf16.mxu0 0
    %812 = vmatpush1.bf16.msra.mxu0 0
    %813 = vmatprep.subr.bf16.mxu0 0
    %814 = vmatpush1.bf16.msra.mxu0 0
    %815 = vmatprep.subr.bf16.mxu0 0
    %816 = vmatpush1.bf16.msra.mxu0 0
    %817 = vmatprep.subr.bf16.mxu0 0
    %818 = vmatpush1.bf16.msra.mxu0 0
    %819 = vmatprep.subr.bf16.mxu0 0
    %820 = vmatpush1.bf16.msra.mxu0 0
    %821 = vmatprep.subr.bf16.mxu0 0
    %822 = vmatpush1.bf16.msra.mxu0 0
    %823 = vmatprep.subr.bf16.mxu0 0
    %824 = vmatpush1.bf16.msra.mxu0 0
    %825 = vmatprep.subr.bf16.mxu0 0
    %826 = vmatpush1.bf16.msra.mxu0 0
    %827 = vmatprep.subr.bf16.mxu0 0
    %828 = vmatpush1.bf16.msra.mxu0 0
    %829 = vmatprep.subr.bf16.mxu0 0
    %830 = vmatpush1.bf16.msra.mxu0 0
    %831 = vmatprep.subr.bf16.mxu0 0
    %832 = vmatpush1.bf16.msra.mxu0 0
    %833 = vmatprep.subr.bf16.mxu0 0
    %834 = vmatpush1.bf16.msra.mxu0 0
    %835 = vmatprep.subr.bf16.mxu0 0
    %836 = vmatpush1.bf16.msra.mxu0 0
    %837 = vmatprep.subr.bf16.mxu0 0
    %838 = vmatpush1.bf16.msra.mxu0 0
    %839 = vmatprep.mubr.bf16.mxu0 0
    %840 = vmatmul.mubr.bf16.gmra.mrb[0].mxu0 %v805
    %v841 = vpop.f32.mrb[0].mxu0
    %v842 = vadd.f32 %v790, %v841
    %v843 = vpop.f32.mrb[0].mxu0
    %v844 = vpop.f32.mrb[0].mxu0
    %v845 = vpop.f32.mrb[0].mxu0
    %846 = vdwg.mxu0
    %v847 = vmax.f32 %v842, 0.0
    %v848 = vpack.c.bf16 %v847, %v847
    %v849 = vld [vmem:[%s8] sm:$0xff]
    %v850 = vld [vmem:[%s8 + $0x8] sm:$0xff]
    %v851 = vld [vmem:[%s8 + $0x10] sm:$0xff]
    %v852 = vld [vmem:[%s8 + $0x18] sm:$0xf]
    %v853 = vld [vmem:[%s8 + $0x1c] sm:$0xff]
    %v854 = vld [vmem:[%s8 + $0x24] sm:$0xff]
    %v855 = vld [vmem:[%s8 + $0x2c] sm:$0xff]
    %v856 = vld [vmem:[%s8 + $0x34] sm:$0xf]
    %v857 = vld [vmem:[%s8 + $0x38] sm:$0xff]
    %v858 = vld [vmem:[%s8 + $0x40] sm:$0xff]
    %v859 = vld [vmem:[%s8 + $0x48] sm:$0xff]
    %v860 = vld [vmem:[%s8 + $0x50] sm:$0xf]
    %v861 = vld [vmem:[%s8 + $0x54] sm:$0xff]
    %v862 = vld [vmem:[%s8 + $0x5c] sm:$0xff]
    %v863 = vld [vmem:[%s8 + $0x64] sm:$0xff]
    %v864 = vld [vmem:[%s8 + $0x6c] sm:$0xf]
    %v865 = vld [vmem:[%s8 + $0x70] sm:$0xff]
    %v866 = vld [vmem:[%s8 + $0x78] sm:$0xff]
    %v867 = vld [vmem:[%s8 + $0x80] sm:$0xff]
    %v868 = vld [vmem:[%s8 + $0x88] sm:$0xf]
    %v869 = vld [vmem:[%s8 + $0x8c] sm:$0xff]
    %v870 = vld [vmem:[%s8 + $0x94] sm:$0xff]
    %v871 = vld [vmem:[%s8 + $0x9c] sm:$0xff]
    %v872 = vld [vmem:[%s8 + $0xa4] sm:$0xf]
    %v873 = vld [vmem:[%s8 + $0xa8] sm:$0xff]
    %v874 = vld [vmem:[%s8 + $0xb0] sm:$0xff]
    %v875 = vld [vmem:[%s8 + $0xb8] sm:$0xff]
    %v876 = vld [vmem:[%s8 + $0xc0] sm:$0xf]
    %v877 = vld [vmem:[%s8 + $0xc4] sm:$0xff]
    %v878 = vld [vmem:[%s8 + $0xcc] sm:$0xff]
    %v879 = vld [vmem:[%s8 + $0xd4] sm:$0xff]
    %v880 = vld [vmem:[%s8 + $0xdc] sm:$0xf]
    %v881 = vld [vmem:[%s8 + $0xe0] sm:$0xff]
    %v882 = vld [vmem:[%s8 + $0xe8] sm:$0xff]
    %v883 = vld [vmem:[%s8 + $0xf0] sm:$0xff]
    %v884 = vld [vmem:[%s8 + $0xf8] sm:$0xf]
    %v885 = vld [vmem:[%s8 + $0xfc] sm:$0xff]
    %v886 = vld [vmem:[%s8 + $0x104] sm:$0xff]
    %v887 = vld [vmem:[%s8 + $0x10c] sm:$0xff]
    %v888 = vld [vmem:[%s8 + $0x114] sm:$0xf]
    %v889 = vld [vmem:[%s8 + $0x118] sm:$0xff]
    %v890 = vld [vmem:[%s8 + $0x120] sm:$0xff]
    %v891 = vld [vmem:[%s8 + $0x128] sm:$0xff]
    %v892 = vld [vmem:[%s8 + $0x130] sm:$0xf]
    %v893 = vld [vmem:[%s8 + $0x134] sm:$0xff]
    %v894 = vld [vmem:[%s8 + $0x13c] sm:$0xff]
    %v895 = vld [vmem:[%s8 + $0x144] sm:$0xff]
    %v896 = vld [vmem:[%s8 + $0x14c] sm:$0xf]
    %v897 = vld [vmem:[%s8 + $0x150] sm:$0xff]
    %v898 = vld [vmem:[%s8 + $0x158] sm:$0xff]
    %v899 = vld [vmem:[%s8 + $0x160] sm:$0xff]
    %v900 = vld [vmem:[%s8 + $0x168] sm:$0xf]
    %v901 = vld [vmem:[%s8 + $0x16c] sm:$0xff]
    %v902 = vld [vmem:[%s8 + $0x174] sm:$0xff]
    %v903 = vld [vmem:[%s8 + $0x17c] sm:$0xff]
    %v904 = vld [vmem:[%s8 + $0x184] sm:$0xf]
    %v905 = vld [vmem:[%s8 + $0x188] sm:$0xff]
    %v906 = vld [vmem:[%s8 + $0x190] sm:$0xff]
    %v907 = vld [vmem:[%s8 + $0x198] sm:$0xff]
    %v908 = vld [vmem:[%s8 + $0x1a0] sm:$0xf]
    %v909 = vld [vmem:[%s8 + $0x1a4] sm:$0xff]
    %v910 = vld [vmem:[%s8 + $0x1ac] sm:$0xff]
    %v911 = vld [vmem:[%s8 + $0x1b4] sm:$0xff]
    %v912 = vld [vmem:[%s8 + $0x1bc] sm:$0xf]
    %v913 = vld [vmem:[%s9] sm:$0x7f]
    %v915 = vlaneseq
    %v916 = vshrl.u32 %v915, 7
    %v917 = vsub.s32 0, %v916
    %v918 = vrot.slane %v913, %v917
    %v919 = vlaneseq
    %v920 = vshrl.u32 %v919, 7
    %v921 = vsub.s32 1, %v920
    %v922 = vrot.slane %v913, %v921
    %v923 = vlaneseq
    %v924 = vshrl.u32 %v923, 7
    %v925 = vsub.s32 2, %v924
    %v926 = vrot.slane %v913, %v925
    %v927 = vlaneseq
    %v928 = vshrl.u32 %v927, 7
    %v929 = vsub.s32 3, %v928
    %v930 = vrot.slane %v913, %v929
    %v931 = vlaneseq
    %v932 = vshrl.u32 %v931, 7
    %v933 = vsub.s32 4, %v932
    %v934 = vrot.slane %v913, %v933
    %v935 = vlaneseq
    %v936 = vshrl.u32 %v935, 7
    %v937 = vsub.s32 5, %v936
    %v938 = vrot.slane %v913, %v937
    %v939 = vlaneseq
    %v940 = vshrl.u32 %v939, 7
    %v941 = vsub.s32 6, %v940
    %v942 = vrot.slane %v913, %v941
    %v1014 = vunpack.c.l.b16 %v849
    %v1015 = vunpack.c.h.b16 %v849
    %v1016 = vunpack.c.l.b16 %v850
    %v1017 = vunpack.c.h.b16 %v850
    %v1018 = vunpack.c.l.b16 %v851
    %v1019 = vunpack.c.h.b16 %v851
    %v1020 = vunpack.c.l.b16 %v852
    %v1021 = vunpack.c.l.b16 %v853
    %v1022 = vunpack.c.h.b16 %v853
    %v1023 = vunpack.c.l.b16 %v854
    %v1024 = vunpack.c.h.b16 %v854
    %v1025 = vunpack.c.l.b16 %v855
    %v1026 = vunpack.c.h.b16 %v855
    %v1027 = vunpack.c.l.b16 %v856
    %v1028 = vunpack.c.l.b16 %v857
    %v1029 = vunpack.c.h.b16 %v857
    %v1030 = vunpack.c.l.b16 %v858
    %v1031 = vunpack.c.h.b16 %v858
    %v1032 = vunpack.c.l.b16 %v859
    %v1033 = vunpack.c.h.b16 %v859
    %v1034 = vunpack.c.l.b16 %v860
    %v1035 = vunpack.c.l.b16 %v861
    %v1036 = vunpack.c.h.b16 %v861
    %v1037 = vunpack.c.l.b16 %v862
    %v1038 = vunpack.c.h.b16 %v862
    %v1039 = vunpack.c.l.b16 %v863
    %v1040 = vunpack.c.h.b16 %v863
    %v1041 = vunpack.c.l.b16 %v864
    %v1042 = vunpack.c.l.b16 %v865
    %v1043 = vunpack.c.h.b16 %v865
    %v1044 = vunpack.c.l.b16 %v866
    %v1045 = vunpack.c.h.b16 %v866
    %v1046 = vunpack.c.l.b16 %v867
    %v1047 = vunpack.c.h.b16 %v867
    %v1048 = vunpack.c.l.b16 %v868
    %v1049 = vunpack.c.l.b16 %v869
    %v1050 = vunpack.c.h.b16 %v869
    %v1051 = vunpack.c.l.b16 %v870
    %v1052 = vunpack.c.h.b16 %v870
    %v1053 = vunpack.c.l.b16 %v871
    %v1054 = vunpack.c.h.b16 %v871
    %v1055 = vunpack.c.l.b16 %v872
    %v1056 = vunpack.c.l.b16 %v873
    %v1057 = vunpack.c.h.b16 %v873
    %v1058 = vunpack.c.l.b16 %v874
    %v1059 = vunpack.c.h.b16 %v874
    %v1060 = vunpack.c.l.b16 %v875
    %v1061 = vunpack.c.h.b16 %v875
    %v1062 = vunpack.c.l.b16 %v876
    %v1063 = vunpack.c.l.b16 %v877
    %v1064 = vunpack.c.h.b16 %v877
    %v1065 = vunpack.c.l.b16 %v878
    %v1066 = vunpack.c.h.b16 %v878
    %v1067 = vunpack.c.l.b16 %v879
    %v1068 = vunpack.c.h.b16 %v879
    %v1069 = vunpack.c.l.b16 %v880
    %v1070 = vunpack.c.l.b16 %v881
    %v1071 = vunpack.c.h.b16 %v881
    %v1072 = vunpack.c.l.b16 %v882
    %v1073 = vunpack.c.h.b16 %v882
    %v1074 = vunpack.c.l.b16 %v883
    %v1075 = vunpack.c.h.b16 %v883
    %v1076 = vunpack.c.l.b16 %v884
    %v1077 = vunpack.c.l.b16 %v885
    %v1078 = vunpack.c.h.b16 %v885
    %v1079 = vunpack.c.l.b16 %v886
    %v1080 = vunpack.c.h.b16 %v886
    %v1081 = vunpack.c.l.b16 %v887
    %v1082 = vunpack.c.h.b16 %v887
    %v1083 = vunpack.c.l.b16 %v888
    %v1084 = vunpack.c.l.b16 %v889
    %v1085 = vunpack.c.h.b16 %v889
    %v1086 = vunpack.c.l.b16 %v890
    %v1087 = vunpack.c.h.b16 %v890
    %v1088 = vunpack.c.l.b16 %v891
    %v1089 = vunpack.c.h.b16 %v891
    %v1090 = vunpack.c.l.b16 %v892
    %v1091 = vunpack.c.l.b16 %v893
    %v1092 = vunpack.c.h.b16 %v893
    %v1093 = vunpack.c.l.b16 %v894
    %v1094 = vunpack.c.h.b16 %v894
    %v1095 = vunpack.c.l.b16 %v895
    %v1096 = vunpack.c.h.b16 %v895
    %v1097 = vunpack.c.l.b16 %v896
    %v1098 = vunpack.c.l.b16 %v897
    %v1099 = vunpack.c.h.b16 %v897
    %v1100 = vunpack.c.l.b16 %v898
    %v1101 = vunpack.c.h.b16 %v898
    %v1102 = vunpack.c.l.b16 %v899
    %v1103 = vunpack.c.h.b16 %v899
    %v1104 = vunpack.c.l.b16 %v900
    %v1105 = vunpack.c.l.b16 %v901
    %v1106 = vunpack.c.h.b16 %v901
    %v1107 = vunpack.c.l.b16 %v902
    %v1108 = vunpack.c.h.b16 %v902
    %v1109 = vunpack.c.l.b16 %v903
    %v1110 = vunpack.c.h.b16 %v903
    %v1111 = vunpack.c.l.b16 %v904
    %v1112 = vunpack.c.l.b16 %v905
    %v1113 = vunpack.c.h.b16 %v905
    %v1114 = vunpack.c.l.b16 %v906
    %v1115 = vunpack.c.h.b16 %v906
    %v1116 = vunpack.c.l.b16 %v907
    %v1117 = vunpack.c.h.b16 %v907
    %v1118 = vunpack.c.l.b16 %v908
    %v1119 = vunpack.c.l.b16 %v909
    %v1120 = vunpack.c.h.b16 %v909
    %v1121 = vunpack.c.l.b16 %v910
    %v1122 = vunpack.c.h.b16 %v910
    %v1123 = vunpack.c.l.b16 %v911
    %v1124 = vunpack.c.h.b16 %v911
    %v1125 = vunpack.c.l.b16 %v912
    %v1126 = vpack.c.b16 %v1021, %v1014
    %v1127 = vpack.c.b16 %v1022, %v1015
    %v1128 = vpack.c.b16 %v1023, %v1016
    %v1129 = vpack.c.b16 %v1024, %v1017
    %v1130 = vpack.c.b16 %v1025, %v1018
    %v1131 = vpack.c.b16 %v1026, %v1019
    %v1132 = vpack.c.b16 %v1027, %v1020
    %v1133 = vpack.c.b16 %v1035, %v1028
    %v1134 = vpack.c.b16 %v1036, %v1029
    %v1135 = vpack.c.b16 %v1037, %v1030
    %v1136 = vpack.c.b16 %v1038, %v1031
    %v1137 = vpack.c.b16 %v1039, %v1032
    %v1138 = vpack.c.b16 %v1040, %v1033
    %v1139 = vpack.c.b16 %v1041, %v1034
    %v1140 = vpack.c.b16 %v1049, %v1042
    %v1141 = vpack.c.b16 %v1050, %v1043
    %v1142 = vpack.c.b16 %v1051, %v1044
    %v1143 = vpack.c.b16 %v1052, %v1045
    %v1144 = vpack.c.b16 %v1053, %v1046
    %v1145 = vpack.c.b16 %v1054, %v1047
    %v1146 = vpack.c.b16 %v1055, %v1048
    %v1147 = vpack.c.b16 %v1063, %v1056
    %v1148 = vpack.c.b16 %v1064, %v1057
    %v1149 = vpack.c.b16 %v1065, %v1058
    %v1150 = vpack.c.b16 %v1066, %v1059
    %v1151 = vpack.c.b16 %v1067, %v1060
    %v1152 = vpack.c.b16 %v1068, %v1061
    %v1153 = vpack.c.b16 %v1069, %v1062
    %v1154 = vpack.c.b16 %v1077, %v1070
    %v1155 = vpack.c.b16 %v1078, %v1071
    %v1156 = vpack.c.b16 %v1079, %v1072
    %v1157 = vpack.c.b16 %v1080, %v1073
    %v1158 = vpack.c.b16 %v1081, %v1074
    %v1159 = vpack.c.b16 %v1082, %v1075
    %v1160 = vpack.c.b16 %v1083, %v1076
    %v1161 = vpack.c.b16 %v1091, %v1084
    %v1162 = vpack.c.b16 %v1092, %v1085
    %v1163 = vpack.c.b16 %v1093, %v1086
    %v1164 = vpack.c.b16 %v1094, %v1087
    %v1165 = vpack.c.b16 %v1095, %v1088
    %v1166 = vpack.c.b16 %v1096, %v1089
    %v1167 = vpack.c.b16 %v1097, %v1090
    %v1168 = vpack.c.b16 %v1105, %v1098
    %v1169 = vpack.c.b16 %v1106, %v1099
    %v1170 = vpack.c.b16 %v1107, %v1100
    %v1171 = vpack.c.b16 %v1108, %v1101
    %v1172 = vpack.c.b16 %v1109, %v1102
    %v1173 = vpack.c.b16 %v1110, %v1103
    %v1174 = vpack.c.b16 %v1111, %v1104
    %v1175 = vpack.c.b16 %v1119, %v1112
    %v1176 = vpack.c.b16 %v1120, %v1113
    %v1177 = vpack.c.b16 %v1121, %v1114
    %v1178 = vpack.c.b16 %v1122, %v1115
    %v1179 = vpack.c.b16 %v1123, %v1116
    %v1180 = vpack.c.b16 %v1124, %v1117
    %v1181 = vpack.c.b16 %v1125, %v1118
    %1238 = vmatprep.subr.bf16.mxu0 %v1127
    %1239 = vmatpush1.bf16.msra.mxu0 %v1126
    %1240 = vmatprep.subr.bf16.mxu0 %v1134
    %1241 = vmatpush1.bf16.msra.mxu0 %v1133
    %1242 = vmatprep.subr.bf16.mxu0 %v1141
    %1243 = vmatpush1.bf16.msra.mxu0 %v1140
    %1244 = vmatprep.subr.bf16.mxu0 %v1148
    %1245 = vmatpush1.bf16.msra.mxu0 %v1147
    %1246 = vmatprep.subr.bf16.mxu0 %v1155
    %1247 = vmatpush1.bf16.msra.mxu0 %v1154
    %1248 = vmatprep.subr.bf16.mxu0 %v1162
    %1249 = vmatpush1.bf16.msra.mxu0 %v1161
    %1250 = vmatprep.subr.bf16.mxu0 %v1169
    %1251 = vmatpush1.bf16.msra.mxu0 %v1168
    %1252 = vmatprep.subr.bf16.mxu0 %v1176
    %1253 = vmatpush1.bf16.msra.mxu0 %v1175
    %1254 = vmatprep.subr.bf16.mxu0 0
    %1255 = vmatpush1.bf16.msra.mxu0 0
    %1256 = vmatprep.subr.bf16.mxu0 0
    %1257 = vmatpush1.bf16.msra.mxu0 0
    %1258 = vmatprep.subr.bf16.mxu0 0
    %1259 = vmatpush1.bf16.msra.mxu0 0
    %1260 = vmatprep.subr.bf16.mxu0 0
    %1261 = vmatpush1.bf16.msra.mxu0 0
    %1262 = vmatprep.subr.bf16.mxu0 0
    %1263 = vmatpush1.bf16.msra.mxu0 0
    %1264 = vmatprep.subr.bf16.mxu0 0
    %1265 = vmatpush1.bf16.msra.mxu0 0
    %1266 = vmatprep.subr.bf16.mxu0 0
    %1267 = vmatpush1.bf16.msra.mxu0 0
    %1268 = vmatprep.subr.bf16.mxu0 0
    %1269 = vmatpush1.bf16.msra.mxu0 0
    %1270 = vmatprep.mubr.bf16.mxu0 0
    %1271 = vmatmul.mubr.bf16.gmra.mrb[0].mxu0 %v848
    %v1272 = vpop.f32.mrb[0].mxu0
    %v1273 = vadd.f32 %v918, %v1272
    %v1274 = vpop.f32.mrb[0].mxu0
    %v1275 = vadd.f32 %v922, %v1274
    %v1276 = vpop.f32.mrb[0].mxu0
    %v1277 = vpop.f32.mrb[0].mxu0
    %1278 = vdwg.mxu0
    %1279 = vmatprep.subr.bf16.mxu0 %v1129
    %1280 = vmatpush1.bf16.msra.mxu0 %v1128
    %1281 = vmatprep.subr.bf16.mxu0 %v1136
    %1282 = vmatpush1.bf16.msra.mxu0 %v1135
    %1283 = vmatprep.subr.bf16.mxu0 %v1143
    %1284 = vmatpush1.bf16.msra.mxu0 %v1142
    %1285 = vmatprep.subr.bf16.mxu0 %v1150
    %1286 = vmatpush1.bf16.msra.mxu0 %v1149
    %1287 = vmatprep.subr.bf16.mxu0 %v1157
    %1288 = vmatpush1.bf16.msra.mxu0 %v1156
    %1289 = vmatprep.subr.bf16.mxu0 %v1164
    %1290 = vmatpush1.bf16.msra.mxu0 %v1163
    %1291 = vmatprep.subr.bf16.mxu0 %v1171
    %1292 = vmatpush1.bf16.msra.mxu0 %v1170
    %1293 = vmatprep.subr.bf16.mxu0 %v1178
    %1294 = vmatpush1.bf16.msra.mxu0 %v1177
    %1295 = vmatprep.subr.bf16.mxu0 0
    %1296 = vmatpush1.bf16.msra.mxu0 0
    %1297 = vmatprep.subr.bf16.mxu0 0
    %1298 = vmatpush1.bf16.msra.mxu0 0
    %1299 = vmatprep.subr.bf16.mxu0 0
    %1300 = vmatpush1.bf16.msra.mxu0 0
    %1301 = vmatprep.subr.bf16.mxu0 0
    %1302 = vmatpush1.bf16.msra.mxu0 0
    %1303 = vmatprep.subr.bf16.mxu0 0
    %1304 = vmatpush1.bf16.msra.mxu0 0
    %1305 = vmatprep.subr.bf16.mxu0 0
    %1306 = vmatpush1.bf16.msra.mxu0 0
    %1307 = vmatprep.subr.bf16.mxu0 0
    %1308 = vmatpush1.bf16.msra.mxu0 0
    %1309 = vmatprep.subr.bf16.mxu0 0
    %1310 = vmatpush1.bf16.msra.mxu0 0
    %1311 = vmatprep.mubr.bf16.mxu0 0
    %1312 = vmatmul.mubr.bf16.gmra.mrb[0].mxu0 %v848
    %v1313 = vpop.f32.mrb[0].mxu0
    %v1314 = vadd.f32 %v926, %v1313
    %v1315 = vpop.f32.mrb[0].mxu0
    %v1316 = vadd.f32 %v930, %v1315
    %v1317 = vpop.f32.mrb[0].mxu0
    %v1318 = vpop.f32.mrb[0].mxu0
    %1319 = vdwg.mxu0
    %1320 = vmatprep.subr.bf16.mxu0 %v1131
    %1321 = vmatpush1.bf16.msra.mxu0 %v1130
    %1322 = vmatprep.subr.bf16.mxu0 %v1138
    %1323 = vmatpush1.bf16.msra.mxu0 %v1137
    %1324 = vmatprep.subr.bf16.mxu0 %v1145
    %1325 = vmatpush1.bf16.msra.mxu0 %v1144
    %1326 = vmatprep.subr.bf16.mxu0 %v1152
    %1327 = vmatpush1.bf16.msra.mxu0 %v1151
    %1328 = vmatprep.subr.bf16.mxu0 %v1159
    %1329 = vmatpush1.bf16.msra.mxu0 %v1158
    %1330 = vmatprep.subr.bf16.mxu0 %v1166
    %1331 = vmatpush1.bf16.msra.mxu0 %v1165
    %1332 = vmatprep.subr.bf16.mxu0 %v1173
    %1333 = vmatpush1.bf16.msra.mxu0 %v1172
    %1334 = vmatprep.subr.bf16.mxu0 %v1180
    %1335 = vmatpush1.bf16.msra.mxu0 %v1179
    %1336 = vmatprep.subr.bf16.mxu0 0
    %1337 = vmatpush1.bf16.msra.mxu0 0
    %1338 = vmatprep.subr.bf16.mxu0 0
    %1339 = vmatpush1.bf16.msra.mxu0 0
    %1340 = vmatprep.subr.bf16.mxu0 0
    %1341 = vmatpush1.bf16.msra.mxu0 0
    %1342 = vmatprep.subr.bf16.mxu0 0
    %1343 = vmatpush1.bf16.msra.mxu0 0
    %1344 = vmatprep.subr.bf16.mxu0 0
    %1345 = vmatpush1.bf16.msra.mxu0 0
    %1346 = vmatprep.subr.bf16.mxu0 0
    %1347 = vmatpush1.bf16.msra.mxu0 0
    %1348 = vmatprep.subr.bf16.mxu0 0
    %1349 = vmatpush1.bf16.msra.mxu0 0
    %1350 = vmatprep.subr.bf16.mxu0 0
    %1351 = vmatpush1.bf16.msra.mxu0 0
    %1352 = vmatprep.mubr.bf16.mxu0 0
    %1353 = vmatmul.mubr.bf16.gmra.mrb[0].mxu0 %v848
    %v1354 = vpop.f32.mrb[0].mxu0
    %v1355 = vadd.f32 %v934, %v1354
    %v1356 = vpop.f32.mrb[0].mxu0
    %v1357 = vadd.f32 %v938, %v1356
    %v1358 = vpop.f32.mrb[0].mxu0
    %v1359 = vpop.f32.mrb[0].mxu0
    %1360 = vdwg.mxu0
    %1361 = vmatprep.subr.bf16.mxu0 0
    %1362 = vmatpush1.bf16.msra.mxu0 %v1132
    %1363 = vmatprep.subr.bf16.mxu0 0
    %1364 = vmatpush1.bf16.msra.mxu0 %v1139
    %1365 = vmatprep.subr.bf16.mxu0 0
    %1366 = vmatpush1.bf16.msra.mxu0 %v1146
    %1367 = vmatprep.subr.bf16.mxu0 0
    %1368 = vmatpush1.bf16.msra.mxu0 %v1153
    %1369 = vmatprep.subr.bf16.mxu0 0
    %1370 = vmatpush1.bf16.msra.mxu0 %v1160
    %1371 = vmatprep.subr.bf16.mxu0 0
    %1372 = vmatpush1.bf16.msra.mxu0 %v1167
    %1373 = vmatprep.subr.bf16.mxu0 0
    %1374 = vmatpush1.bf16.msra.mxu0 %v1174
    %1375 = vmatprep.subr.bf16.mxu0 0
    %1376 = vmatpush1.bf16.msra.mxu0 %v1181
    %1377 = vmatprep.subr.bf16.mxu0 0
    %1378 = vmatpush1.bf16.msra.mxu0 0
    %1379 = vmatprep.subr.bf16.mxu0 0
    %1380 = vmatpush1.bf16.msra.mxu0 0
    %1381 = vmatprep.subr.bf16.mxu0 0
    %1382 = vmatpush1.bf16.msra.mxu0 0
    %1383 = vmatprep.subr.bf16.mxu0 0
    %1384 = vmatpush1.bf16.msra.mxu0 0
    %1385 = vmatprep.subr.bf16.mxu0 0
    %1386 = vmatpush1.bf16.msra.mxu0 0
    %1387 = vmatprep.subr.bf16.mxu0 0
    %1388 = vmatpush1.bf16.msra.mxu0 0
    %1389 = vmatprep.subr.bf16.mxu0 0
    %1390 = vmatpush1.bf16.msra.mxu0 0
    %1391 = vmatprep.subr.bf16.mxu0 0
    %1392 = vmatpush1.bf16.msra.mxu0 0
    %1393 = vmatprep.mubr.bf16.mxu0 0
    %1394 = vmatmul.mubr.bf16.gmra.mrb[0].mxu0 %v848
    %v1395 = vpop.f32.mrb[0].mxu0
    %v1396 = vadd.f32 %v942, %v1395
    %v1397 = vpop.f32.mrb[0].mxu0
    %v1398 = vpop.f32.mrb[0].mxu0
    %v1399 = vpop.f32.mrb[0].mxu0
    %1400 = vdwg.mxu0
    %v1401 = vxor.u32 %v1273, 2147483648
    %v1402 = vxor.u32 %v1275, 2147483648
    %v1403 = vxor.u32 %v1314, 2147483648
    %v1404 = vxor.u32 %v1316, 2147483648
    %v1405 = vxor.u32 %v1355, 2147483648
    %v1406 = vxor.u32 %v1357, 2147483648
    %v1407 = vxor.u32 %v1396, 2147483648
    %v1408 = vmul.f32 %v1401, 1.442695
    %v1409 = vpow.pop %v1408
    %v1410 = vmul.f32 %v1402, 1.442695
    %v1411 = vpow.pop %v1410
    %v1412 = vmul.f32 %v1403, 1.442695
    %v1413 = vpow.pop %v1412
    %v1414 = vmul.f32 %v1404, 1.442695
    %v1415 = vpow.pop %v1414
    %v1416 = vmul.f32 %v1405, 1.442695
    %v1417 = vpow.pop %v1416
    %v1418 = vmul.f32 %v1406, 1.442695
    %v1419 = vpow.pop %v1418
    %v1420 = vmul.f32 %v1407, 1.442695
    %v1421 = vpow.pop %v1420
    %v1422 = vadd.f32 %v1409, 1.0
    %v1423 = vadd.f32 %v1411, 1.0
    %v1424 = vadd.f32 %v1413, 1.0
    %v1425 = vadd.f32 %v1415, 1.0
    %v1426 = vadd.f32 %v1417, 1.0
    %v1427 = vadd.f32 %v1419, 1.0
    %v1428 = vadd.f32 %v1421, 1.0
    %v1429 = vrcp.pop %v1422
    %v1430 = vmul.f32 1.0, %v1429
    %v1431 = vrcp.pop %v1423
    %v1432 = vmul.f32 1.0, %v1431
    %v1433 = vrcp.pop %v1424
    %v1434 = vmul.f32 1.0, %v1433
    %v1435 = vrcp.pop %v1425
    %v1436 = vmul.f32 1.0, %v1435
    %v1437 = vrcp.pop %v1426
    %v1438 = vmul.f32 1.0, %v1437
    %v1439 = vrcp.pop %v1427
    %v1440 = vmul.f32 1.0, %v1439
    %v1441 = vrcp.pop %v1428
    %v1442 = vmul.f32 1.0, %v1441
    %1443 = vst [vmem:[#allocation2] sm:$0xff] %v1430
    %1444 = vst [vmem:[#allocation2 + $0x8] sm:$0xff] %v1432
    %1445 = vst [vmem:[#allocation2 + $0x10] sm:$0xff] %v1434
    %1446 = vst [vmem:[#allocation2 + $0x18] sm:$0xff] %v1436
    %1447 = vst [vmem:[#allocation2 + $0x20] sm:$0xff] %v1438
    %1448 = vst [vmem:[#allocation2 + $0x28] sm:$0xff] %v1440
    %1449 = vst.msk [vmem:[#allocation2 + $0x30] sm:$0xff] %vm453, %v1442
    // Predicated region
    $region42: #{tpu_custom_call.1} parent=1 // pred_check
      _
    $region43: #{tpu_custom_call.1} parent=1 // pred_check_branch
      %1451 = sbr.rel (0) target = $region45
    $region44: #{tpu_custom_call.1} parent=1 // pred_region
      %s1453 = ssub.s32 896, 896
      %1454 = vsyncadd [#allocation3], %s1453
      %s1456 = sshll.u32 [#allocation2], 4
      %s1457 = int_to_ptr.vmem [resolvable:$true] %s1456
      %1459 = dma.vmem_to_hbm [thread:$0]  %s1457, 896, %s10, [#allocation3]
    $region45: #{tpu_custom_call.1} parent=1 // pred_fallthru
      _
    // Predicated region
    $region46: #{tpu_custom_call.1} parent=1 // pred_check
      _
    $region47: #{tpu_custom_call.1} parent=1 // pred_check_branch
      %1461 = sbr.rel (0) target = $region49
    $region48: #{tpu_custom_call.1} parent=1 // pred_region
      %s1463 = ssub.s32 128, 128
      %1464 = vsyncadd [#allocation5], %s1463
      %s1466 = sshll.u32 [#allocation4], 4
      %s1467 = int_to_ptr.vmem [resolvable:$true] %s1466
      %1469 = dma.vmem_to_hbm [thread:$0]  %s1467, 128, %s11, [#allocation5]
    $region49: #{tpu_custom_call.1} parent=1 // pred_fallthru
      _
    // Predicated region
    $region50: #{tpu_custom_call.1} parent=1 // pred_check
      _
    $region51: #{tpu_custom_call.1} parent=1 // pred_check_branch
      %1471 = sbr.rel (0) target = $region53
    $region52: #{tpu_custom_call.1} parent=1 // pred_region
      %1472 = dma.done [#allocation3], 896
    $region53: #{tpu_custom_call.1} parent=1 // pred_fallthru
      _
    // Predicated region
    $region54: #{tpu_custom_call.1} parent=1 // pred_check
      _
    $region55: #{tpu_custom_call.1} parent=1 // pred_check_branch
      %1474 = sbr.rel (0) target = $region57
    $region56: #{tpu_custom_call.1} parent=1 // pred_region
      %1475 = dma.done [#allocation5], 128
    $region57: #{tpu_custom_call.1} parent=1 // pred_fallthru
      _
    %1476 = vsyncpa [#allocation3], 1
    %1477 = vsyncpa [#allocation5], 1

</llo_original>
